<compile_context>
chip_gen: v7x
topology: tpu7x:2x2x1
jax: 0.10.0
libtpu: 0.0.40
codegen_flags: <defaults>
</compile_context>

<pallas_src>
import jax
import jax.numpy as jnp
from jax import lax
from jax.experimental import pallas as pl
from jax.experimental.pallas import tpu as pltpu


def _satt3_kernel(x_ref, w1_ref, w2_ref, o_ref):
    """One batch element, everything in VMEM.

    x_ref : [1, L*N, 12C]  regrouped input (row = l*N + n, col = c*12 + j)
    w1_ref: [12C, C]       conv1 weight, columns ordered (head g, c4)
    w2_ref: [12C, C]       conv2 weight, columns ordered (head g, c4)
    o_ref : [1, L, N, N]
    """
    L = o_ref.shape[1]
    N = o_ref.shape[2]
    C = w1_ref.shape[1]
    G = 4
    C4 = C // G

    x = x_ref[0]                                                         # [L*N, 12C]
    y1 = jnp.dot(x, w1_ref[...], preferred_element_type=jnp.float32)    # [L*N, C]
    y2 = jnp.dot(x, w2_ref[...], preferred_element_type=jnp.float32)    # [L*N, C]

    inv_g = 1.0 / G
    for l in range(L):                                   # static unroll (L = 4)
        acc = jnp.zeros((N, N), jnp.float32)
        for g in range(G):                               # static unroll (G = 4)
            f1 = y1[l * N:(l + 1) * N, g * C4:(g + 1) * C4]      # [N, C4]
            f2 = y2[l * N:(l + 1) * N, g * C4:(g + 1) * C4]      # [N, C4]
            # s[n, q] = sum_c4 f1[n, c4] * f2[q, c4]   (A @ B^T pattern)
            s = lax.dot_general(f1, f2, (((1,), (1,)), ((), ())),
                                preferred_element_type=jnp.float32)     # [N, N]
            acc = acc + jax.nn.sigmoid(s)
        o_ref[0, l] = acc * inv_g                        # mean over the 4 heads


def satt3_forward(seq, w1, w2):
    """seq: [B, C, N, T] (T % 12 == 0, C % 4 == 0); w1, w2: [C, 12C] -> [B, T//12, N, N]."""
    B, C, N, T = seq.shape
    L = T // 12
    CH = 12 * C
    C4 = C // 4

    # Regroup time into (12 -> channel factor, L -> time groups):
    #   xk[b, l*N + n, c*12 + j] = seq[b, c, n, j*L + l]
    xk = jnp.transpose(seq.reshape(B, C, N, 12, L),
                       (0, 4, 2, 1, 3)).reshape(B, L * N, CH)
    # Permute output channels so every head group is a contiguous column block:
    #   w_k[ch, g*C4 + c4] = w[c4*4 + g, ch]
    w1k = jnp.transpose(w1.reshape(C4, 4, CH), (2, 1, 0)).reshape(CH, C)
    w2k = jnp.transpose(w2.reshape(C4, 4, CH), (2, 1, 0)).reshape(CH, C)

    return pl.pallas_call(
        _satt3_kernel,
        out_shape=jax.ShapeDtypeStruct((B, L, N, N), jnp.float32),
        grid=(B,),
        in_specs=[pl.BlockSpec((1, L * N, CH), lambda b: (b, 0, 0)),
                  pl.BlockSpec((CH, C), lambda b: (0, 0)),
                  pl.BlockSpec((CH, C), lambda b: (0, 0))],
        out_specs=pl.BlockSpec((1, L, N, N), lambda b: (b, 0, 0, 0)),
        compiler_params=pltpu.CompilerParams(
            dimension_semantics=("arbitrary",)),
    )(xk.astype(jnp.float32), w1k.astype(jnp.float32), w2k.astype(jnp.float32))


def satt3_reference(seq, w1, w2):
    """Pure-jnp transcription of the PyTorch forward (correctness check only)."""
    B, C, N, T = seq.shape
    L = T // 12
    hi = lax.Precision.HIGHEST
    s = jnp.transpose(seq, (0, 1, 3, 2)).reshape(B, C * 12, L, N)
    s = jnp.transpose(s, (0, 1, 3, 2))                               # [B, 12C, N, L]
    y1 = jnp.einsum('oc,bcnl->bonl', w1, s, precision=hi)            # conv1 (1x1)
    y2 = jnp.einsum('oc,bcnl->bonl', w2, s, precision=hi)            # conv2 (1x1)
    C4 = C // 4
    f1 = jnp.transpose(y1.reshape(B, C4, 4, N, L), (0, 3, 1, 4, 2))  # [B,N,C4,L,4]
    f2 = jnp.transpose(y2.reshape(B, C4, 4, N, L), (0, 1, 3, 4, 2))  # [B,C4,N,L,4]
    logits = jnp.einsum('bnclm,bcqlm->bnqlm', f1, f2, precision=hi)
    logits = jnp.transpose(logits, (0, 3, 1, 2, 4))                  # [B,L,N,N,4]
    return jnp.mean(jax.nn.sigmoid(logits), axis=-1)                 # [B,L,N,N]


if __name__ == "__main__":
    # forward requires T % 12 == 0 and c_in % 4 == 0 (as in DGCN: T = 48)
    B, c_in, num_nodes, T = 2, 8, 16, 48

    key = jax.random.PRNGKey(0)
    kx, k1, k2 = jax.random.split(key, 3)
    seq = jax.random.normal(kx, (B, c_in, num_nodes, T), jnp.float32)
    w1 = (0.1 * jax.random.normal(k1, (c_in, c_in * 12))).astype(jnp.float32)
    w2 = (0.1 * jax.random.normal(k2, (c_in, c_in * 12))).astype(jnp.float32)

    out = satt3_forward(seq, w1, w2)
    jax.block_until_ready(out)

    assert out.shape == (B, T // 12, num_nodes, num_nodes)
    ref = satt3_reference(seq, w1, w2)
    err = float(jnp.max(jnp.abs(out - ref)))
    assert err < 2e-3, f"kernel/reference mismatch: max abs err = {err}"
    assert bool(jnp.all(jnp.isfinite(out)))
    print("KERNEL_OK")
</pallas_src>

<mosaic_0001>
module attributes {stable_mosaic.version = 11 : i64} {
  func.func @_satt3_kernel(%arg0: i32, %arg1: memref<1x64x96xf32, #tpu.memory_space<vmem>>, %arg2: memref<96x8xf32, #tpu.memory_space<vmem>>, %arg3: memref<96x8xf32, #tpu.memory_space<vmem>>, %arg4: memref<1x4x16x16xf32, #tpu.memory_space<vmem>>) attributes {dimension_semantics = [#tpu.dimension_semantics<arbitrary>], iteration_bounds = array<i64: 2>, scalar_prefetch = 0 : i64, scratch_operands = 0 : i64, tpu.core_type = #tpu.core_type<tc>, window_params = [{transform_indices = @transform_0, window_bounds = array<i64: 1, 64, 96>}, {pipeline_mode = #tpu.pipeline_mode<synchronous>, transform_indices = @transform_1, window_bounds = array<i64: 96, 8>}, {pipeline_mode = #tpu.pipeline_mode<synchronous>, transform_indices = @transform_2, window_bounds = array<i64: 96, 8>}, {transform_indices = @transform_3, window_bounds = array<i64: 1, 4, 16, 16>}]} {
    %c0 = arith.constant 0 : index
    %c0_0 = arith.constant 0 : index
    %c0_1 = arith.constant 0 : index
    %0 = vector.load %arg1[%c0, %c0_0, %c0_1] : memref<1x64x96xf32, #tpu.memory_space<vmem>>, vector<1x64x96xf32>
    %1 = vector.shape_cast %0 : vector<1x64x96xf32> to vector<64x96xf32>
    %c0_2 = arith.constant 0 : index
    %c0_3 = arith.constant 0 : index
    %2 = vector.load %arg2[%c0_2, %c0_3] : memref<96x8xf32, #tpu.memory_space<vmem>>, vector<96x8xf32>
    %cst = arith.constant dense<0.000000e+00> : vector<64x8xf32>
    %3 = tpu.matmul %1, %2, %cst {dimension_numbers = #tpu.dot_dimension_numbers<[1], [0], [0], [1], [0, 0, 1, 1], [], []>} : vector<64x96xf32>, vector<96x8xf32>, vector<64x8xf32> -> vector<64x8xf32>
    %c0_4 = arith.constant 0 : index
    %c0_5 = arith.constant 0 : index
    %4 = vector.load %arg3[%c0_4, %c0_5] : memref<96x8xf32, #tpu.memory_space<vmem>>, vector<96x8xf32>
    %cst_6 = arith.constant dense<0.000000e+00> : vector<64x8xf32>
    %5 = tpu.matmul %1, %4, %cst_6 {dimension_numbers = #tpu.dot_dimension_numbers<[1], [0], [0], [1], [0, 0, 1, 1], [], []>} : vector<64x96xf32>, vector<96x8xf32>, vector<64x8xf32> -> vector<64x8xf32>
    %cst_7 = arith.constant 0.000000e+00 : f32
    %6 = vector.broadcast %cst_7 : f32 to vector<16x16xf32>
    %7 = vector.extract_strided_slice %3 {offsets = [0, 0], sizes = [16, 2], strides = [1, 1]} : vector<64x8xf32> to vector<16x2xf32>
    %8 = vector.extract_strided_slice %5 {offsets = [0, 0], sizes = [16, 2], strides = [1, 1]} : vector<64x8xf32> to vector<16x2xf32>
    %cst_8 = arith.constant dense<0.000000e+00> : vector<16x16xf32>
    %9 = tpu.matmul %7, %8, %cst_8 {dimension_numbers = #tpu.dot_dimension_numbers<[1], [1], [0], [0], [0, 0, 1, 0], [], []>} : vector<16x2xf32>, vector<16x2xf32>, vector<16x16xf32> -> vector<16x16xf32>
    %10 = arith.negf %9 : vector<16x16xf32>
    %11 = math.exp %10 : vector<16x16xf32>
    %cst_9 = arith.constant 1.000000e+00 : f32
    %12 = vector.broadcast %cst_9 : f32 to vector<16x16xf32>
    %13 = arith.addf %12, %11 : vector<16x16xf32>
    %14 = arith.divf %12, %13 : vector<16x16xf32>
    %15 = arith.addf %6, %14 : vector<16x16xf32>
    %16 = vector.extract_strided_slice %3 {offsets = [0, 2], sizes = [16, 2], strides = [1, 1]} : vector<64x8xf32> to vector<16x2xf32>
    %17 = vector.extract_strided_slice %5 {offsets = [0, 2], sizes = [16, 2], strides = [1, 1]} : vector<64x8xf32> to vector<16x2xf32>
    %cst_10 = arith.constant dense<0.000000e+00> : vector<16x16xf32>
    %18 = tpu.matmul %16, %17, %cst_10 {dimension_numbers = #tpu.dot_dimension_numbers<[1], [1], [0], [0], [0, 0, 1, 0], [], []>} : vector<16x2xf32>, vector<16x2xf32>, vector<16x16xf32> -> vector<16x16xf32>
    %19 = arith.negf %18 : vector<16x16xf32>
    %20 = math.exp %19 : vector<16x16xf32>
    %cst_11 = arith.constant 1.000000e+00 : f32
    %21 = vector.broadcast %cst_11 : f32 to vector<16x16xf32>
    %22 = arith.addf %21, %20 : vector<16x16xf32>
    %23 = arith.divf %21, %22 : vector<16x16xf32>
    %24 = arith.addf %15, %23 : vector<16x16xf32>
    %25 = vector.extract_strided_slice %3 {offsets = [0, 4], sizes = [16, 2], strides = [1, 1]} : vector<64x8xf32> to vector<16x2xf32>
    %26 = vector.extract_strided_slice %5 {offsets = [0, 4], sizes = [16, 2], strides = [1, 1]} : vector<64x8xf32> to vector<16x2xf32>
    %cst_12 = arith.constant dense<0.000000e+00> : vector<16x16xf32>
    %27 = tpu.matmul %25, %26, %cst_12 {dimension_numbers = #tpu.dot_dimension_numbers<[1], [1], [0], [0], [0, 0, 1, 0], [], []>} : vector<16x2xf32>, vector<16x2xf32>, vector<16x16xf32> -> vector<16x16xf32>
    %28 = arith.negf %27 : vector<16x16xf32>
    %29 = math.exp %28 : vector<16x16xf32>
    %cst_13 = arith.constant 1.000000e+00 : f32
    %30 = vector.broadcast %cst_13 : f32 to vector<16x16xf32>
    %31 = arith.addf %30, %29 : vector<16x16xf32>
    %32 = arith.divf %30, %31 : vector<16x16xf32>
    %33 = arith.addf %24, %32 : vector<16x16xf32>
    %34 = vector.extract_strided_slice %3 {offsets = [0, 6], sizes = [16, 2], strides = [1, 1]} : vector<64x8xf32> to vector<16x2xf32>
    %35 = vector.extract_strided_slice %5 {offsets = [0, 6], sizes = [16, 2], strides = [1, 1]} : vector<64x8xf32> to vector<16x2xf32>
    %cst_14 = arith.constant dense<0.000000e+00> : vector<16x16xf32>
    %36 = tpu.matmul %34, %35, %cst_14 {dimension_numbers = #tpu.dot_dimension_numbers<[1], [1], [0], [0], [0, 0, 1, 0], [], []>} : vector<16x2xf32>, vector<16x2xf32>, vector<16x16xf32> -> vector<16x16xf32>
    %37 = arith.negf %36 : vector<16x16xf32>
    %38 = math.exp %37 : vector<16x16xf32>
    %cst_15 = arith.constant 1.000000e+00 : f32
    %39 = vector.broadcast %cst_15 : f32 to vector<16x16xf32>
    %40 = arith.addf %39, %38 : vector<16x16xf32>
    %41 = arith.divf %39, %40 : vector<16x16xf32>
    %42 = arith.addf %33, %41 : vector<16x16xf32>
    %cst_16 = arith.constant 2.500000e-01 : f32
    %43 = vector.broadcast %cst_16 : f32 to vector<16x16xf32>
    %44 = arith.mulf %42, %43 : vector<16x16xf32>
    %c0_17 = arith.constant 0 : index
    %c0_18 = arith.constant 0 : index
    %c0_19 = arith.constant 0 : index
    %c0_20 = arith.constant 0 : index
    %45 = vector.load %arg4[%c0_17, %c0_18, %c0_19, %c0_20] : memref<1x4x16x16xf32, #tpu.memory_space<vmem>>, vector<1x1x16x16xf32>
    %46 = vector.shape_cast %45 : vector<1x1x16x16xf32> to vector<16x16xf32>
    %47 = vector.shape_cast %44 : vector<16x16xf32> to vector<1x1x16x16xf32>
    tpu.vector_store %arg4[%c0_17, %c0_18, %c0_19, %c0_20], %47 {strides = array<i32>} : memref<1x4x16x16xf32, #tpu.memory_space<vmem>>, vector<1x1x16x16xf32>,
    %cst_21 = arith.constant 0.000000e+00 : f32
    %48 = vector.broadcast %cst_21 : f32 to vector<16x16xf32>
    %49 = vector.extract_strided_slice %3 {offsets = [16, 0], sizes = [16, 2], strides = [1, 1]} : vector<64x8xf32> to vector<16x2xf32>
    %50 = vector.extract_strided_slice %5 {offsets = [16, 0], sizes = [16, 2], strides = [1, 1]} : vector<64x8xf32> to vector<16x2xf32>
    %cst_22 = arith.constant dense<0.000000e+00> : vector<16x16xf32>
    %51 = tpu.matmul %49, %50, %cst_22 {dimension_numbers = #tpu.dot_dimension_numbers<[1], [1], [0], [0], [0, 0, 1, 0], [], []>} : vector<16x2xf32>, vector<16x2xf32>, vector<16x16xf32> -> vector<16x16xf32>
    %52 = arith.negf %51 : vector<16x16xf32>
    %53 = math.exp %52 : vector<16x16xf32>
    %cst_23 = arith.constant 1.000000e+00 : f32
    %54 = vector.broadcast %cst_23 : f32 to vector<16x16xf32>
    %55 = arith.addf %54, %53 : vector<16x16xf32>
    %56 = arith.divf %54, %55 : vector<16x16xf32>
    %57 = arith.addf %48, %56 : vector<16x16xf32>
    %58 = vector.extract_strided_slice %3 {offsets = [16, 2], sizes = [16, 2], strides = [1, 1]} : vector<64x8xf32> to vector<16x2xf32>
    %59 = vector.extract_strided_slice %5 {offsets = [16, 2], sizes = [16, 2], strides = [1, 1]} : vector<64x8xf32> to vector<16x2xf32>
    %cst_24 = arith.constant dense<0.000000e+00> : vector<16x16xf32>
    %60 = tpu.matmul %58, %59, %cst_24 {dimension_numbers = #tpu.dot_dimension_numbers<[1], [1], [0], [0], [0, 0, 1, 0], [], []>} : vector<16x2xf32>, vector<16x2xf32>, vector<16x16xf32> -> vector<16x16xf32>
    %61 = arith.negf %60 : vector<16x16xf32>
    %62 = math.exp %61 : vector<16x16xf32>
    %cst_25 = arith.constant 1.000000e+00 : f32
    %63 = vector.broadcast %cst_25 : f32 to vector<16x16xf32>
    %64 = arith.addf %63, %62 : vector<16x16xf32>
    %65 = arith.divf %63, %64 : vector<16x16xf32>
    %66 = arith.addf %57, %65 : vector<16x16xf32>
    %67 = vector.extract_strided_slice %3 {offsets = [16, 4], sizes = [16, 2], strides = [1, 1]} : vector<64x8xf32> to vector<16x2xf32>
    %68 = vector.extract_strided_slice %5 {offsets = [16, 4], sizes = [16, 2], strides = [1, 1]} : vector<64x8xf32> to vector<16x2xf32>
    %cst_26 = arith.constant dense<0.000000e+00> : vector<16x16xf32>
    %69 = tpu.matmul %67, %68, %cst_26 {dimension_numbers = #tpu.dot_dimension_numbers<[1], [1], [0], [0], [0, 0, 1, 0], [], []>} : vector<16x2xf32>, vector<16x2xf32>, vector<16x16xf32> -> vector<16x16xf32>
    %70 = arith.negf %69 : vector<16x16xf32>
    %71 = math.exp %70 : vector<16x16xf32>
    %cst_27 = arith.constant 1.000000e+00 : f32
    %72 = vector.broadcast %cst_27 : f32 to vector<16x16xf32>
    %73 = arith.addf %72, %71 : vector<16x16xf32>
    %74 = arith.divf %72, %73 : vector<16x16xf32>
    %75 = arith.addf %66, %74 : vector<16x16xf32>
    %76 = vector.extract_strided_slice %3 {offsets = [16, 6], sizes = [16, 2], strides = [1, 1]} : vector<64x8xf32> to vector<16x2xf32>
    %77 = vector.extract_strided_slice %5 {offsets = [16, 6], sizes = [16, 2], strides = [1, 1]} : vector<64x8xf32> to vector<16x2xf32>
    %cst_28 = arith.constant dense<0.000000e+00> : vector<16x16xf32>
    %78 = tpu.matmul %76, %77, %cst_28 {dimension_numbers = #tpu.dot_dimension_numbers<[1], [1], [0], [0], [0, 0, 1, 0], [], []>} : vector<16x2xf32>, vector<16x2xf32>, vector<16x16xf32> -> vector<16x16xf32>
    %79 = arith.negf %78 : vector<16x16xf32>
    %80 = math.exp %79 : vector<16x16xf32>
    %cst_29 = arith.constant 1.000000e+00 : f32
    %81 = vector.broadcast %cst_29 : f32 to vector<16x16xf32>
    %82 = arith.addf %81, %80 : vector<16x16xf32>
    %83 = arith.divf %81, %82 : vector<16x16xf32>
    %84 = arith.addf %75, %83 : vector<16x16xf32>
    %cst_30 = arith.constant 2.500000e-01 : f32
    %85 = vector.broadcast %cst_30 : f32 to vector<16x16xf32>
    %86 = arith.mulf %84, %85 : vector<16x16xf32>
    %c0_31 = arith.constant 0 : index
    %c1 = arith.constant 1 : index
    %c0_32 = arith.constant 0 : index
    %c0_33 = arith.constant 0 : index
    %87 = vector.load %arg4[%c0_31, %c1, %c0_32, %c0_33] : memref<1x4x16x16xf32, #tpu.memory_space<vmem>>, vector<1x1x16x16xf32>
    %88 = vector.shape_cast %87 : vector<1x1x16x16xf32> to vector<16x16xf32>
    %89 = vector.shape_cast %86 : vector<16x16xf32> to vector<1x1x16x16xf32>
    tpu.vector_store %arg4[%c0_31, %c1, %c0_32, %c0_33], %89 {strides = array<i32>} : memref<1x4x16x16xf32, #tpu.memory_space<vmem>>, vector<1x1x16x16xf32>,
    %cst_34 = arith.constant 0.000000e+00 : f32
    %90 = vector.broadcast %cst_34 : f32 to vector<16x16xf32>
    %91 = vector.extract_strided_slice %3 {offsets = [32, 0], sizes = [16, 2], strides = [1, 1]} : vector<64x8xf32> to vector<16x2xf32>
    %92 = vector.extract_strided_slice %5 {offsets = [32, 0], sizes = [16, 2], strides = [1, 1]} : vector<64x8xf32> to vector<16x2xf32>
    %cst_35 = arith.constant dense<0.000000e+00> : vector<16x16xf32>
    %93 = tpu.matmul %91, %92, %cst_35 {dimension_numbers = #tpu.dot_dimension_numbers<[1], [1], [0], [0], [0, 0, 1, 0], [], []>} : vector<16x2xf32>, vector<16x2xf32>, vector<16x16xf32> -> vector<16x16xf32>
    %94 = arith.negf %93 : vector<16x16xf32>
    %95 = math.exp %94 : vector<16x16xf32>
    %cst_36 = arith.constant 1.000000e+00 : f32
    %96 = vector.broadcast %cst_36 : f32 to vector<16x16xf32>
    %97 = arith.addf %96, %95 : vector<16x16xf32>
    %98 = arith.divf %96, %97 : vector<16x16xf32>
    %99 = arith.addf %90, %98 : vector<16x16xf32>
    %100 = vector.extract_strided_slice %3 {offsets = [32, 2], sizes = [16, 2], strides = [1, 1]} : vector<64x8xf32> to vector<16x2xf32>
    %101 = vector.extract_strided_slice %5 {offsets = [32, 2], sizes = [16, 2], strides = [1, 1]} : vector<64x8xf32> to vector<16x2xf32>
    %cst_37 = arith.constant dense<0.000000e+00> : vector<16x16xf32>
    %102 = tpu.matmul %100, %101, %cst_37 {dimension_numbers = #tpu.dot_dimension_numbers<[1], [1], [0], [0], [0, 0, 1, 0], [], []>} : vector<16x2xf32>, vector<16x2xf32>, vector<16x16xf32> -> vector<16x16xf32>
    %103 = arith.negf %102 : vector<16x16xf32>
    %104 = math.exp %103 : vector<16x16xf32>
    %cst_38 = arith.constant 1.000000e+00 : f32
    %105 = vector.broadcast %cst_38 : f32 to vector<16x16xf32>
    %106 = arith.addf %105, %104 : vector<16x16xf32>
    %107 = arith.divf %105, %106 : vector<16x16xf32>
    %108 = arith.addf %99, %107 : vector<16x16xf32>
    %109 = vector.extract_strided_slice %3 {offsets = [32, 4], sizes = [16, 2], strides = [1, 1]} : vector<64x8xf32> to vector<16x2xf32>
    %110 = vector.extract_strided_slice %5 {offsets = [32, 4], sizes = [16, 2], strides = [1, 1]} : vector<64x8xf32> to vector<16x2xf32>
    %cst_39 = arith.constant dense<0.000000e+00> : vector<16x16xf32>
    %111 = tpu.matmul %109, %110, %cst_39 {dimension_numbers = #tpu.dot_dimension_numbers<[1], [1], [0], [0], [0, 0, 1, 0], [], []>} : vector<16x2xf32>, vector<16x2xf32>, vector<16x16xf32> -> vector<16x16xf32>
    %112 = arith.negf %111 : vector<16x16xf32>
    %113 = math.exp %112 : vector<16x16xf32>
    %cst_40 = arith.constant 1.000000e+00 : f32
    %114 = vector.broadcast %cst_40 : f32 to vector<16x16xf32>
    %115 = arith.addf %114, %113 : vector<16x16xf32>
    %116 = arith.divf %114, %115 : vector<16x16xf32>
    %117 = arith.addf %108, %116 : vector<16x16xf32>
    %118 = vector.extract_strided_slice %3 {offsets = [32, 6], sizes = [16, 2], strides = [1, 1]} : vector<64x8xf32> to vector<16x2xf32>
    %119 = vector.extract_strided_slice %5 {offsets = [32, 6], sizes = [16, 2], strides = [1, 1]} : vector<64x8xf32> to vector<16x2xf32>
    %cst_41 = arith.constant dense<0.000000e+00> : vector<16x16xf32>
    %120 = tpu.matmul %118, %119, %cst_41 {dimension_numbers = #tpu.dot_dimension_numbers<[1], [1], [0], [0], [0, 0, 1, 0], [], []>} : vector<16x2xf32>, vector<16x2xf32>, vector<16x16xf32> -> vector<16x16xf32>
    %121 = arith.negf %120 : vector<16x16xf32>
    %122 = math.exp %121 : vector<16x16xf32>
    %cst_42 = arith.constant 1.000000e+00 : f32
    %123 = vector.broadcast %cst_42 : f32 to vector<16x16xf32>
    %124 = arith.addf %123, %122 : vector<16x16xf32>
    %125 = arith.divf %123, %124 : vector<16x16xf32>
    %126 = arith.addf %117, %125 : vector<16x16xf32>
    %cst_43 = arith.constant 2.500000e-01 : f32
    %127 = vector.broadcast %cst_43 : f32 to vector<16x16xf32>
    %128 = arith.mulf %126, %127 : vector<16x16xf32>
    %c0_44 = arith.constant 0 : index
    %c2 = arith.constant 2 : index
    %c0_45 = arith.constant 0 : index
    %c0_46 = arith.constant 0 : index
    %129 = vector.load %arg4[%c0_44, %c2, %c0_45, %c0_46] : memref<1x4x16x16xf32, #tpu.memory_space<vmem>>, vector<1x1x16x16xf32>
    %130 = vector.shape_cast %129 : vector<1x1x16x16xf32> to vector<16x16xf32>
    %131 = vector.shape_cast %128 : vector<16x16xf32> to vector<1x1x16x16xf32>
    tpu.vector_store %arg4[%c0_44, %c2, %c0_45, %c0_46], %131 {strides = array<i32>} : memref<1x4x16x16xf32, #tpu.memory_space<vmem>>, vector<1x1x16x16xf32>,
    %cst_47 = arith.constant 0.000000e+00 : f32
    %132 = vector.broadcast %cst_47 : f32 to vector<16x16xf32>
    %133 = vector.extract_strided_slice %3 {offsets = [48, 0], sizes = [16, 2], strides = [1, 1]} : vector<64x8xf32> to vector<16x2xf32>
    %134 = vector.extract_strided_slice %5 {offsets = [48, 0], sizes = [16, 2], strides = [1, 1]} : vector<64x8xf32> to vector<16x2xf32>
    %cst_48 = arith.constant dense<0.000000e+00> : vector<16x16xf32>
    %135 = tpu.matmul %133, %134, %cst_48 {dimension_numbers = #tpu.dot_dimension_numbers<[1], [1], [0], [0], [0, 0, 1, 0], [], []>} : vector<16x2xf32>, vector<16x2xf32>, vector<16x16xf32> -> vector<16x16xf32>
    %136 = arith.negf %135 : vector<16x16xf32>
    %137 = math.exp %136 : vector<16x16xf32>
    %cst_49 = arith.constant 1.000000e+00 : f32
    %138 = vector.broadcast %cst_49 : f32 to vector<16x16xf32>
    %139 = arith.addf %138, %137 : vector<16x16xf32>
    %140 = arith.divf %138, %139 : vector<16x16xf32>
    %141 = arith.addf %132, %140 : vector<16x16xf32>
    %142 = vector.extract_strided_slice %3 {offsets = [48, 2], sizes = [16, 2], strides = [1, 1]} : vector<64x8xf32> to vector<16x2xf32>
    %143 = vector.extract_strided_slice %5 {offsets = [48, 2], sizes = [16, 2], strides = [1, 1]} : vector<64x8xf32> to vector<16x2xf32>
    %cst_50 = arith.constant dense<0.000000e+00> : vector<16x16xf32>
    %144 = tpu.matmul %142, %143, %cst_50 {dimension_numbers = #tpu.dot_dimension_numbers<[1], [1], [0], [0], [0, 0, 1, 0], [], []>} : vector<16x2xf32>, vector<16x2xf32>, vector<16x16xf32> -> vector<16x16xf32>
    %145 = arith.negf %144 : vector<16x16xf32>
    %146 = math.exp %145 : vector<16x16xf32>
    %cst_51 = arith.constant 1.000000e+00 : f32
    %147 = vector.broadcast %cst_51 : f32 to vector<16x16xf32>
    %148 = arith.addf %147, %146 : vector<16x16xf32>
    %149 = arith.divf %147, %148 : vector<16x16xf32>
    %150 = arith.addf %141, %149 : vector<16x16xf32>
    %151 = vector.extract_strided_slice %3 {offsets = [48, 4], sizes = [16, 2], strides = [1, 1]} : vector<64x8xf32> to vector<16x2xf32>
    %152 = vector.extract_strided_slice %5 {offsets = [48, 4], sizes = [16, 2], strides = [1, 1]} : vector<64x8xf32> to vector<16x2xf32>
    %cst_52 = arith.constant dense<0.000000e+00> : vector<16x16xf32>
    %153 = tpu.matmul %151, %152, %cst_52 {dimension_numbers = #tpu.dot_dimension_numbers<[1], [1], [0], [0], [0, 0, 1, 0], [], []>} : vector<16x2xf32>, vector<16x2xf32>, vector<16x16xf32> -> vector<16x16xf32>
    %154 = arith.negf %153 : vector<16x16xf32>
    %155 = math.exp %154 : vector<16x16xf32>
    %cst_53 = arith.constant 1.000000e+00 : f32
    %156 = vector.broadcast %cst_53 : f32 to vector<16x16xf32>
    %157 = arith.addf %156, %155 : vector<16x16xf32>
    %158 = arith.divf %156, %157 : vector<16x16xf32>
    %159 = arith.addf %150, %158 : vector<16x16xf32>
    %160 = vector.extract_strided_slice %3 {offsets = [48, 6], sizes = [16, 2], strides = [1, 1]} : vector<64x8xf32> to vector<16x2xf32>
    %161 = vector.extract_strided_slice %5 {offsets = [48, 6], sizes = [16, 2], strides = [1, 1]} : vector<64x8xf32> to vector<16x2xf32>
    %cst_54 = arith.constant dense<0.000000e+00> : vector<16x16xf32>
    %162 = tpu.matmul %160, %161, %cst_54 {dimension_numbers = #tpu.dot_dimension_numbers<[1], [1], [0], [0], [0, 0, 1, 0], [], []>} : vector<16x2xf32>, vector<16x2xf32>, vector<16x16xf32> -> vector<16x16xf32>
    %163 = arith.negf %162 : vector<16x16xf32>
    %164 = math.exp %163 : vector<16x16xf32>
    %cst_55 = arith.constant 1.000000e+00 : f32
    %165 = vector.broadcast %cst_55 : f32 to vector<16x16xf32>
    %166 = arith.addf %165, %164 : vector<16x16xf32>
    %167 = arith.divf %165, %166 : vector<16x16xf32>
    %168 = arith.addf %159, %167 : vector<16x16xf32>
    %cst_56 = arith.constant 2.500000e-01 : f32
    %169 = vector.broadcast %cst_56 : f32 to vector<16x16xf32>
    %170 = arith.mulf %168, %169 : vector<16x16xf32>
    %c0_57 = arith.constant 0 : index
    %c3 = arith.constant 3 : index
    %c0_58 = arith.constant 0 : index
    %c0_59 = arith.constant 0 : index
    %171 = vector.load %arg4[%c0_57, %c3, %c0_58, %c0_59] : memref<1x4x16x16xf32, #tpu.memory_space<vmem>>, vector<1x1x16x16xf32>
    %172 = vector.shape_cast %171 : vector<1x1x16x16xf32> to vector<16x16xf32>
    %173 = vector.shape_cast %170 : vector<16x16xf32> to vector<1x1x16x16xf32>
    tpu.vector_store %arg4[%c0_57, %c3, %c0_58, %c0_59], %173 {strides = array<i32>} : memref<1x4x16x16xf32, #tpu.memory_space<vmem>>, vector<1x1x16x16xf32>,
    return
  }
  func.func @transform_0(%arg0: i32) -> (i32, i32, i32) {
    %c0_i32 = arith.constant 0 : i32
    %c0_i32_0 = arith.constant 0 : i32
    %c0_i32_1 = arith.constant 0 : i32
    return %arg0, %c0_i32, %c0_i32_0 : i32, i32, i32
  }
  func.func @transform_1(%arg0: i32) -> (i32, i32) {
    %c0_i32 = arith.constant 0 : i32
    %c0_i32_0 = arith.constant 0 : i32
    %c0_i32_1 = arith.constant 0 : i32
    return %c0_i32, %c0_i32_0 : i32, i32
  }
  func.func @transform_2(%arg0: i32) -> (i32, i32) {
    %c0_i32 = arith.constant 0 : i32
    %c0_i32_0 = arith.constant 0 : i32
    %c0_i32_1 = arith.constant 0 : i32
    return %c0_i32, %c0_i32_0 : i32, i32
  }
  func.func @transform_3(%arg0: i32) -> (i32, i32, i32, i32) {
    %c0_i32 = arith.constant 0 : i32
    %c0_i32_0 = arith.constant 0 : i32
    %c0_i32_1 = arith.constant 0 : i32
    %c0_i32_2 = arith.constant 0 : i32
    return %arg0, %c0_i32, %c0_i32_0, %c0_i32_1 : i32, i32, i32, i32
  }
}

</mosaic_0001>

<llo_original>
// kernel: tpu_custom_call.1
$region0: #{tpu_custom_call.1}
  #allocation0 [shape = 'u32[]', space=smem, size = 0x4, offset = 0x4, fixed_abs, tag = 'smem constant byte address 0x4 - core index']
  #allocation1 [shape = 'u32[144,128]{1,0:T(1,128)}', space=vmem, size = 0x12000, scoped, tag = 'internal scratch']
  %s0 = inlined_call_operand.vmem [shape: f32[2,64,96], index: 0, kind: input, shape index: {}]
  %s1 = inlined_call_operand.vmem [shape: f32[96,8], index: 1, kind: input, shape index: {}]
  %s2 = inlined_call_operand.vmem [shape: f32[96,8], index: 2, kind: input, shape index: {}]
  %s3 = inlined_call_operand.hbm [shape: f32[2,4,16,16], index: 3, kind: output, shape index: {}]
  %s4 = sld [smem:[#allocation0]]
  $region45: #{tpu_custom_call.1} parent=0
    _
  %s6 = ssub.s32 1, %s4
  %s7 = scalar_select 0, %s6, %s4
  $region1: #{tpu_custom_call.1} parent=0
    #allocation2 [shape = 'u8[65536]{0}', space=vmem, size = 0x10000, scoped, tag = 'output window, operand 0']
    #allocation3 [shape = 's32[2]{0}', space=sflag, size = 0x8, scoped, tag = 'scoped memory for tpu_custom_call.1']
    %8 = vsyncpa [#allocation3], 0
    %s9 = scalar_lea.sflag [#allocation3], 1
    %10 = vsyncpa %s9, 0
    loop: start=0, step=1, limit=4
    $region2: #{tpu_custom_call.1} parent=1 // loop_pre_header
      _
    $region3: #{tpu_custom_call.1} parent=1 // loop_header
      %s12 = sphi 0, %s16
      %p13 = scmp.ge.s32.totalorder %s12, 4
      %s22 = sphi 0, %s24
      %s25 = sphi 0, %s22
      %s26 = sphi 0, %s25
      %s42 = sphi 0, %s26
      %s46 = sphi 0, %s46
      %s48 = sphi 0, %s46
      %s49 = sphi 0, %s48
      %s63 = sphi 0, %s49
      %s67 = sphi 0, %s67
      %s69 = sphi 0, %s67
      %s70 = sphi 0, %s69
      %s84 = sphi 0, %s70
      %s90 = sphi 0, %s92
      %s93 = sphi 0, %s90
      %s94 = sphi 0, %s93
      %s110 = sphi 0, %s94
    $region4: #{tpu_custom_call.1} parent=1 // loop_header_branch
      %15 = sbr.rel (%p13) target = $region8
    $region5: #{tpu_custom_call.1} parent=1 // loop_body
      %s17 = ssub.s32 %s12, 1
      %s18 = ssub.s32 %s12, 2
      %s19 = sadd.s32 %s12, 1
      %s20 = ssub.s32 %s12, %s19
      %p21 = scmp.eq.s32.totalorder %s20, 0
      %s23 = sadd.s32 %s22, 1
      %s24 = scalar_select %p21, %s22, %s23
      %p27 = pneg %p21
      %p28 = scmp.eq.s32.totalorder %s12, 1
      %p29 = por %p27, %p28
      %p30 = scmp.ne.s32.totalorder %s22, %s25
      %p31 = scmp.eq.s32.totalorder %s12, 0
      %p32 = por %p30, %p31
      %p33 = scmp.ne.s32.totalorder %s22, %s25
      %p34 = scmp.eq.s32.totalorder %s17, 1
      %p35 = por %p33, %p34
      %p36 = scmp.ne.s32.totalorder %s25, %s26
      %p37 = scmp.eq.s32.totalorder %s17, 0
      %p38 = por %p36, %p37
      %p39 = scmp.ne.s32.totalorder %s25, %s26
      %p40 = scmp.eq.s32.totalorder %s18, 1
      %p41 = por %p39, %p40
      %p43 = scmp.ne.s32.totalorder %s26, %s42
      %p44 = scmp.eq.s32.totalorder %s18, 0
      %p45 = por %p43, %p44
      %s47 = sadd.s32 %s46, 1
      %p50 = scmp.eq.s32.totalorder %s12, 1
      %p51 = scmp.ne.s32.totalorder %s46, %s48
      %p52 = scmp.eq.s32.totalorder %s12, 0
      %p53 = por %p51, %p52
      %p54 = scmp.ne.s32.totalorder %s46, %s48
      %p55 = scmp.eq.s32.totalorder %s17, 1
      %p56 = por %p54, %p55
      %p57 = scmp.ne.s32.totalorder %s48, %s49
      %p58 = scmp.eq.s32.totalorder %s17, 0
      %p59 = por %p57, %p58
      %p60 = scmp.ne.s32.totalorder %s48, %s49
      %p61 = scmp.eq.s32.totalorder %s18, 1
      %p62 = por %p60, %p61
      %p64 = scmp.ne.s32.totalorder %s49, %s63
      %p65 = scmp.eq.s32.totalorder %s18, 0
      %p66 = por %p64, %p65
      %s68 = sadd.s32 %s67, 1
      %p71 = scmp.eq.s32.totalorder %s12, 1
      %p72 = scmp.ne.s32.totalorder %s67, %s69
      %p73 = scmp.eq.s32.totalorder %s12, 0
      %p74 = por %p72, %p73
      %p75 = scmp.ne.s32.totalorder %s67, %s69
      %p76 = scmp.eq.s32.totalorder %s17, 1
      %p77 = por %p75, %p76
      %p78 = scmp.ne.s32.totalorder %s69, %s70
      %p79 = scmp.eq.s32.totalorder %s17, 0
      %p80 = por %p78, %p79
      %p81 = scmp.ne.s32.totalorder %s69, %s70
      %p82 = scmp.eq.s32.totalorder %s18, 1
      %p83 = por %p81, %p82
      %p85 = scmp.ne.s32.totalorder %s70, %s84
      %p86 = scmp.eq.s32.totalorder %s18, 0
      %p87 = por %p85, %p86
      %s88 = ssub.s32 %s12, %s19
      %p89 = scmp.eq.s32.totalorder %s88, 0
      %s91 = sadd.s32 %s90, 1
      %s92 = scalar_select %p89, %s90, %s91
      %p95 = pneg %p89
      %p96 = scmp.eq.s32.totalorder %s12, 1
      %p97 = por %p95, %p96
      %p98 = scmp.ne.s32.totalorder %s90, %s93
      %p99 = scmp.eq.s32.totalorder %s12, 0
      %p100 = por %p98, %p99
      %p101 = scmp.ne.s32.totalorder %s90, %s93
      %p102 = scmp.eq.s32.totalorder %s17, 1
      %p103 = por %p101, %p102
      %p104 = scmp.ne.s32.totalorder %s93, %s94
      %p105 = scmp.eq.s32.totalorder %s17, 0
      %p106 = por %p104, %p105
      %p107 = scmp.ne.s32.totalorder %s93, %s94
      %p108 = scmp.eq.s32.totalorder %s18, 1
      %p109 = por %p107, %p108
      %p111 = scmp.ne.s32.totalorder %s94, %s110
      %p112 = scmp.eq.s32.totalorder %s18, 0
      %p113 = por %p111, %p112
      %p114 = scmp.le.s32.totalorder 1, %s12
      %p115 = scmp.lt.s32.totalorder %s12, 3
      %p116 = pnand %p114, %p115
      %p117 = pneg %p116
      // Predicated region
      $region9: #{tpu_custom_call.1} parent=5 // pred_check
        _
      $region10: #{tpu_custom_call.1} parent=5 // pred_check_branch
        %119 = sbr.rel (%p116) target = $region12
      $region11: #{tpu_custom_call.1} parent=5 // pred_region
        %s120 = ssub.s32 %s12, 1
        // Predicated region
        $region13: #{tpu_custom_call.1} parent=11 // pred_check
          %p121 = pneg %p59
        $region14: #{tpu_custom_call.1} parent=11 // pred_check_branch
          %123 = sbr.rel (%p121) target = $region16
        $region15: #{tpu_custom_call.1} parent=11 // pred_region
          _
        $region16: #{tpu_custom_call.1} parent=11 // pred_fallthru
          _
        // Predicated region
        $region17: #{tpu_custom_call.1} parent=11 // pred_check
          %p124 = pneg %p80
        $region18: #{tpu_custom_call.1} parent=11 // pred_check_branch
          %126 = sbr.rel (%p124) target = $region20
        $region19: #{tpu_custom_call.1} parent=11 // pred_region
          _
        $region20: #{tpu_custom_call.1} parent=11 // pred_fallthru
          _
      $region12: #{tpu_custom_call.1} parent=5 // pred_fallthru
        _
      %p127 = scmp.lt.s32.totalorder %s12, 2
      // Predicated region
      $region21: #{tpu_custom_call.1} parent=5 // pred_check
        %p128 = pneg %p127
      $region22: #{tpu_custom_call.1} parent=5 // pred_check_branch
        %130 = sbr.rel (%p128) target = $region24
      $region23: #{tpu_custom_call.1} parent=5 // pred_region
        // Predicated region
        $region25: #{tpu_custom_call.1} parent=23 // pred_check
          %p131 = pneg %p32
        $region26: #{tpu_custom_call.1} parent=23 // pred_check_branch
          %133 = sbr.rel (%p131) target = $region28
        $region27: #{tpu_custom_call.1} parent=23 // pred_region
          %p134 = scmp.lt.s32.totalorder %s12, 1
          %s135 = scalar_select %p134, %s12, 1
          %s136 = smul.addr %s135, 8
          %s137 = smul.addr %s136, 8
          %s138 = scalar_lea.vmem %s0, %s137
        $region28: #{tpu_custom_call.1} parent=23 // pred_fallthru
          _
      $region24: #{tpu_custom_call.1} parent=5 // pred_fallthru
        _
      %p139 = scmp.le.s32.totalorder 1, %s12
      %p140 = scmp.lt.s32.totalorder %s12, 3
      %p141 = pnand %p139, %p140
      %p142 = pneg %p141
      // Predicated region
      $region29: #{tpu_custom_call.1} parent=5 // pred_check
        _
      $region30: #{tpu_custom_call.1} parent=5 // pred_check_branch
        %144 = sbr.rel (%p141) target = $region32
      $region31: #{tpu_custom_call.1} parent=5 // pred_region
        %s145 = ssub.s32 %s12, 1
        %p146 = scmp.lt.s32.totalorder %s17, 1
        %s147 = scalar_select %p146, %s17, 1
        %s148 = smul.addr %s147, 8
        %s149 = smul.addr %s148, 8
        %s150 = scalar_lea.vmem %s0, %s149
        %p151 = pneg %p38
        %p152 = pneg %p35
        %p153 = pneg %p59
        %p154 = pneg %p56
        %p155 = pneg %p80
        %p156 = pneg %p77
        %p157 = pneg %p106
        %p158 = pneg %p103
        %s159 = sand.u32 %s93, 1
        %s160 = scalar_lea.sflag [#allocation3], %s159
        %s161 = sand.u32 %s93, 1
        %s162 = smul.addr %s161, 64
        %s163 = scalar_lea.vmem [#allocation2], %s162
        %p164 = scmp.lt.s32.totalorder %s17, 1
        %s165 = scalar_select %p164, %s17, 1
        %s166 = smul.addr %s165, 8
        %s167 = smul.addr %s166, 8
        %s168 = scalar_lea.vmem %s0, %s167
        %v169 = vld [vmem:[%s168] sm:$0xff]
        %v170 = vld [vmem:[%s168 + $0x8] sm:$0xff]
        %v171 = vld [vmem:[%s168 + $0x10] sm:$0xff]
        %v172 = vld [vmem:[%s168 + $0x18] sm:$0xff]
        %v173 = vld [vmem:[%s168 + $0x20] sm:$0xff]
        %v174 = vld [vmem:[%s168 + $0x28] sm:$0xff]
        %v175 = vld [vmem:[%s168 + $0x30] sm:$0xff]
        %v176 = vld [vmem:[%s168 + $0x38] sm:$0xff]
        %v177 = vld [vmem:[%s1] sm:$0xff]
        %v178 = vld [vmem:[%s1 + $0x8] sm:$0xff]
        %v179 = vld [vmem:[%s1 + $0x10] sm:$0xff]
        %v180 = vld [vmem:[%s1 + $0x18] sm:$0xff]
        %v181 = vld [vmem:[%s1 + $0x20] sm:$0xff]
        %v182 = vld [vmem:[%s1 + $0x28] sm:$0xff]
        %v183 = vld [vmem:[%s1 + $0x30] sm:$0xff]
        %v184 = vld [vmem:[%s1 + $0x38] sm:$0xff]
        %v185 = vld [vmem:[%s1 + $0x40] sm:$0xff]
        %v186 = vld [vmem:[%s1 + $0x48] sm:$0xff]
        %v187 = vld [vmem:[%s1 + $0x50] sm:$0xff]
        %v188 = vld [vmem:[%s1 + $0x58] sm:$0xff]
        %vm189 = vcmask 785408
        %v191 = vsel %vm189, %v169, 0
        %v194 = vsel %vm189, %v170, 0
        %v197 = vsel %vm189, %v171, 0
        %v200 = vsel %vm189, %v172, 0
        %v203 = vsel %vm189, %v173, 0
        %v206 = vsel %vm189, %v174, 0
        %v209 = vsel %vm189, %v175, 0
        %v212 = vsel %vm189, %v176, 0
        %214 = vmatprep.subr.mxu0 0.0
        %215 = vmatpush1.msra.mxu0 %v177
        %216 = vmatprep.subr.mxu0 0.0
        %217 = vmatpush1.msra.mxu0 %v178
        %218 = vmatprep.subr.mxu0 0.0
        %219 = vmatpush1.msra.mxu0 %v179
        %220 = vmatprep.subr.mxu0 0.0
        %221 = vmatpush1.msra.mxu0 %v180
        %222 = vmatprep.subr.mxu0 0.0
        %223 = vmatpush1.msra.mxu0 %v181
        %224 = vmatprep.subr.mxu0 0.0
        %225 = vmatpush1.msra.mxu0 %v182
        %226 = vmatprep.subr.mxu0 0.0
        %227 = vmatpush1.msra.mxu0 %v183
        %228 = vmatprep.subr.mxu0 0.0
        %229 = vmatpush1.msra.mxu0 %v184
        %230 = vmatprep.subr.mxu0 0.0
        %231 = vmatpush1.msra.mxu0 %v185
        %232 = vmatprep.subr.mxu0 0.0
        %233 = vmatpush1.msra.mxu0 %v186
        %234 = vmatprep.subr.mxu0 0.0
        %235 = vmatpush1.msra.mxu0 %v187
        %236 = vmatprep.subr.mxu0 0.0
        %237 = vmatpush1.msra.mxu0 %v188
        %238 = vmatprep.subr.mxu0 0.0
        %239 = vmatpush1.msra.mxu0 0.0
        %240 = vmatprep.subr.mxu0 0.0
        %241 = vmatpush1.msra.mxu0 0.0
        %242 = vmatprep.subr.mxu0 0.0
        %243 = vmatpush1.msra.mxu0 0.0
        %244 = vmatprep.subr.mxu0 0.0
        %245 = vmatpush1.msra.mxu0 0.0
        %246 = vmatprep.subr.mxu0 0.0
        %247 = vmatpush1.msra.mxu0 0.0
        %248 = vmatprep.subr.mxu0 0.0
        %249 = vmatpush1.msra.mxu0 0.0
        %250 = vmatprep.subr.mxu0 0.0
        %251 = vmatpush1.msra.mxu0 0.0
        %252 = vmatprep.subr.mxu0 0.0
        %253 = vmatpush1.msra.mxu0 0.0
        %254 = vmatprep.subr.mxu0 0.0
        %255 = vmatpush1.msra.mxu0 0.0
        %256 = vmatprep.subr.mxu0 0.0
        %257 = vmatpush1.msra.mxu0 0.0
        %258 = vmatprep.subr.mxu0 0.0
        %259 = vmatpush1.msra.mxu0 0.0
        %260 = vmatprep.subr.mxu0 0.0
        %261 = vmatpush1.msra.mxu0 0.0
        %262 = vmatprep.subr.mxu0 0.0
        %263 = vmatpush1.msra.mxu0 0.0
        %264 = vmatprep.subr.mxu0 0.0
        %265 = vmatpush1.msra.mxu0 0.0
        %266 = vmatprep.subr.mxu0 0.0
        %267 = vmatpush1.msra.mxu0 0.0
        %268 = vmatprep.subr.mxu0 0.0
        %269 = vmatpush1.msra.mxu0 0.0
        %270 = vmatprep.subr.mxu0 0.0
        %271 = vmatpush1.msra.mxu0 0.0
        %272 = vmatprep.subr.mxu0 0.0
        %273 = vmatpush1.msra.mxu0 0.0
        %274 = vmatprep.subr.mxu0 0.0
        %275 = vmatpush1.msra.mxu0 0.0
        %276 = vmatprep.subr.mxu0 0.0
        %277 = vmatpush1.msra.mxu0 0.0
        %278 = vmatprep.mubr.f32.mxu0 0.0
        %279 = vmatmul.mubr.f32.gmra.mrb[0].mxu0 %v191
        %v280 = vpop.f32.mrb[0].mxu0
        %v281 = vadd.f32 0.0, %v280
        %v282 = vpop.f32.mrb[0].mxu0
        %283 = vmatprep.mubr.f32.mxu0 0.0
        %284 = vmatmul.mubr.f32.gmra.mrb[0].mxu0 %v194
        %v285 = vpop.f32.mrb[0].mxu0
        %v286 = vadd.f32 0.0, %v285
        %v287 = vpop.f32.mrb[0].mxu0
        %288 = vmatprep.mubr.f32.mxu0 0.0
        %289 = vmatmul.mubr.f32.gmra.mrb[0].mxu0 %v197
        %v290 = vpop.f32.mrb[0].mxu0
        %v291 = vadd.f32 0.0, %v290
        %v292 = vpop.f32.mrb[0].mxu0
        %293 = vmatprep.mubr.f32.mxu0 0.0
        %294 = vmatmul.mubr.f32.gmra.mrb[0].mxu0 %v200
        %v295 = vpop.f32.mrb[0].mxu0
        %v296 = vadd.f32 0.0, %v295
        %v297 = vpop.f32.mrb[0].mxu0
        %298 = vmatprep.mubr.f32.mxu0 0.0
        %299 = vmatmul.mubr.f32.gmra.mrb[0].mxu0 %v203
        %v300 = vpop.f32.mrb[0].mxu0
        %v301 = vadd.f32 0.0, %v300
        %v302 = vpop.f32.mrb[0].mxu0
        %303 = vmatprep.mubr.f32.mxu0 0.0
        %304 = vmatmul.mubr.f32.gmra.mrb[0].mxu0 %v206
        %v305 = vpop.f32.mrb[0].mxu0
        %v306 = vadd.f32 0.0, %v305
        %v307 = vpop.f32.mrb[0].mxu0
        %308 = vmatprep.mubr.f32.mxu0 0.0
        %309 = vmatmul.mubr.f32.gmra.mrb[0].mxu0 %v209
        %v310 = vpop.f32.mrb[0].mxu0
        %v311 = vadd.f32 0.0, %v310
        %v312 = vpop.f32.mrb[0].mxu0
        %313 = vmatprep.mubr.f32.mxu0 0.0
        %314 = vmatmul.mubr.f32.gmra.mrb[0].mxu0 %v212
        %v315 = vpop.f32.mrb[0].mxu0
        %v316 = vadd.f32 0.0, %v315
        %v317 = vpop.f32.mrb[0].mxu0
        %318 = vdwg.mxu0
        %v319 = vld [vmem:[%s2] sm:$0xff]
        %v320 = vld [vmem:[%s2 + $0x8] sm:$0xff]
        %v321 = vld [vmem:[%s2 + $0x10] sm:$0xff]
        %v322 = vld [vmem:[%s2 + $0x18] sm:$0xff]
        %v323 = vld [vmem:[%s2 + $0x20] sm:$0xff]
        %v324 = vld [vmem:[%s2 + $0x28] sm:$0xff]
        %v325 = vld [vmem:[%s2 + $0x30] sm:$0xff]
        %v326 = vld [vmem:[%s2 + $0x38] sm:$0xff]
        %v327 = vld [vmem:[%s2 + $0x40] sm:$0xff]
        %v328 = vld [vmem:[%s2 + $0x48] sm:$0xff]
        %v329 = vld [vmem:[%s2 + $0x50] sm:$0xff]
        %v330 = vld [vmem:[%s2 + $0x58] sm:$0xff]
        %331 = vmatprep.subr.mxu0 0.0
        %332 = vmatpush1.msra.mxu0 %v319
        %333 = vmatprep.subr.mxu0 0.0
        %334 = vmatpush1.msra.mxu0 %v320
        %335 = vmatprep.subr.mxu0 0.0
        %336 = vmatpush1.msra.mxu0 %v321
        %337 = vmatprep.subr.mxu0 0.0
        %338 = vmatpush1.msra.mxu0 %v322
        %339 = vmatprep.subr.mxu0 0.0
        %340 = vmatpush1.msra.mxu0 %v323
        %341 = vmatprep.subr.mxu0 0.0
        %342 = vmatpush1.msra.mxu0 %v324
        %343 = vmatprep.subr.mxu0 0.0
        %344 = vmatpush1.msra.mxu0 %v325
        %345 = vmatprep.subr.mxu0 0.0
        %346 = vmatpush1.msra.mxu0 %v326
        %347 = vmatprep.subr.mxu0 0.0
        %348 = vmatpush1.msra.mxu0 %v327
        %349 = vmatprep.subr.mxu0 0.0
        %350 = vmatpush1.msra.mxu0 %v328
        %351 = vmatprep.subr.mxu0 0.0
        %352 = vmatpush1.msra.mxu0 %v329
        %353 = vmatprep.subr.mxu0 0.0
        %354 = vmatpush1.msra.mxu0 %v330
        %355 = vmatprep.subr.mxu0 0.0
        %356 = vmatpush1.msra.mxu0 0.0
        %357 = vmatprep.subr.mxu0 0.0
        %358 = vmatpush1.msra.mxu0 0.0
        %359 = vmatprep.subr.mxu0 0.0
        %360 = vmatpush1.msra.mxu0 0.0
        %361 = vmatprep.subr.mxu0 0.0
        %362 = vmatpush1.msra.mxu0 0.0
        %363 = vmatprep.subr.mxu0 0.0
        %364 = vmatpush1.msra.mxu0 0.0
        %365 = vmatprep.subr.mxu0 0.0
        %366 = vmatpush1.msra.mxu0 0.0
        %367 = vmatprep.subr.mxu0 0.0
        %368 = vmatpush1.msra.mxu0 0.0
        %369 = vmatprep.subr.mxu0 0.0
        %370 = vmatpush1.msra.mxu0 0.0
        %371 = vmatprep.subr.mxu0 0.0
        %372 = vmatpush1.msra.mxu0 0.0
        %373 = vmatprep.subr.mxu0 0.0
        %374 = vmatpush1.msra.mxu0 0.0
        %375 = vmatprep.subr.mxu0 0.0
        %376 = vmatpush1.msra.mxu0 0.0
        %377 = vmatprep.subr.mxu0 0.0
        %378 = vmatpush1.msra.mxu0 0.0
        %379 = vmatprep.subr.mxu0 0.0
        %380 = vmatpush1.msra.mxu0 0.0
        %381 = vmatprep.subr.mxu0 0.0
        %382 = vmatpush1.msra.mxu0 0.0
        %383 = vmatprep.subr.mxu0 0.0
        %384 = vmatpush1.msra.mxu0 0.0
        %385 = vmatprep.subr.mxu0 0.0
        %386 = vmatpush1.msra.mxu0 0.0
        %387 = vmatprep.subr.mxu0 0.0
        %388 = vmatpush1.msra.mxu0 0.0
        %389 = vmatprep.subr.mxu0 0.0
        %390 = vmatpush1.msra.mxu0 0.0
        %391 = vmatprep.subr.mxu0 0.0
        %392 = vmatpush1.msra.mxu0 0.0
        %393 = vmatprep.subr.mxu0 0.0
        %394 = vmatpush1.msra.mxu0 0.0
        %395 = vmatprep.mubr.f32.mxu0 0.0
        %396 = vmatmul.mubr.f32.gmra.mrb[0].mxu0 %v191
        %v397 = vpop.f32.mrb[0].mxu0
        %v398 = vadd.f32 0.0, %v397
        %v399 = vpop.f32.mrb[0].mxu0
        %400 = vmatprep.mubr.f32.mxu0 0.0
        %401 = vmatmul.mubr.f32.gmra.mrb[0].mxu0 %v194
        %v402 = vpop.f32.mrb[0].mxu0
        %v403 = vadd.f32 0.0, %v402
        %v404 = vpop.f32.mrb[0].mxu0
        %405 = vmatprep.mubr.f32.mxu0 0.0
        %406 = vmatmul.mubr.f32.gmra.mrb[0].mxu0 %v197
        %v407 = vpop.f32.mrb[0].mxu0
        %v408 = vadd.f32 0.0, %v407
        %v409 = vpop.f32.mrb[0].mxu0
        %410 = vmatprep.mubr.f32.mxu0 0.0
        %411 = vmatmul.mubr.f32.gmra.mrb[0].mxu0 %v200
        %v412 = vpop.f32.mrb[0].mxu0
        %v413 = vadd.f32 0.0, %v412
        %v414 = vpop.f32.mrb[0].mxu0
        %415 = vmatprep.mubr.f32.mxu0 0.0
        %416 = vmatmul.mubr.f32.gmra.mrb[0].mxu0 %v203
        %v417 = vpop.f32.mrb[0].mxu0
        %v418 = vadd.f32 0.0, %v417
        %v419 = vpop.f32.mrb[0].mxu0
        %420 = vmatprep.mubr.f32.mxu0 0.0
        %421 = vmatmul.mubr.f32.gmra.mrb[0].mxu0 %v206
        %v422 = vpop.f32.mrb[0].mxu0
        %v423 = vadd.f32 0.0, %v422
        %v424 = vpop.f32.mrb[0].mxu0
        %425 = vmatprep.mubr.f32.mxu0 0.0
        %426 = vmatmul.mubr.f32.gmra.mrb[0].mxu0 %v209
        %v427 = vpop.f32.mrb[0].mxu0
        %v428 = vadd.f32 0.0, %v427
        %v429 = vpop.f32.mrb[0].mxu0
        %430 = vmatprep.mubr.f32.mxu0 0.0
        %431 = vmatmul.mubr.f32.gmra.mrb[0].mxu0 %v212
        %v432 = vpop.f32.mrb[0].mxu0
        %v433 = vadd.f32 0.0, %v432
        %v434 = vpop.f32.mrb[0].mxu0
        %435 = vdwg.mxu0
        %vm436 = vcmask 15360
        %v438 = vsel %vm436, %v281, 0
        %v441 = vsel %vm436, %v286, 0
        %v444 = vsel %vm436, %v398, 0
        %v447 = vsel %vm436, %v403, 0
        %449 = vmatprep.subr.mxu0 0.0
        %450 = vmatpush1.xpose.msra.mxu0 %v444
        %451 = vmatprep.subr.mxu0 0.0
        %452 = vmatpush1.xpose.msra.mxu0 %v447
        %453 = vmatprep.subr.mxu0 0.0
        %454 = vmatpush1.xpose.msra.mxu0 0.0
        %455 = vmatprep.subr.mxu0 0.0
        %456 = vmatpush1.xpose.msra.mxu0 0.0
        %457 = vmatprep.subr.mxu0 0.0
        %458 = vmatpush1.xpose.msra.mxu0 0.0
        %459 = vmatprep.subr.mxu0 0.0
        %460 = vmatpush1.xpose.msra.mxu0 0.0
        %461 = vmatprep.subr.mxu0 0.0
        %462 = vmatpush1.xpose.msra.mxu0 0.0
        %463 = vmatprep.subr.mxu0 0.0
        %464 = vmatpush1.xpose.msra.mxu0 0.0
        %465 = vmatprep.subr.mxu0 0.0
        %466 = vmatpush1.xpose.msra.mxu0 0.0
        %467 = vmatprep.subr.mxu0 0.0
        %468 = vmatpush1.xpose.msra.mxu0 0.0
        %469 = vmatprep.subr.mxu0 0.0
        %470 = vmatpush1.xpose.msra.mxu0 0.0
        %471 = vmatprep.subr.mxu0 0.0
        %472 = vmatpush1.xpose.msra.mxu0 0.0
        %473 = vmatprep.subr.mxu0 0.0
        %474 = vmatpush1.xpose.msra.mxu0 0.0
        %475 = vmatprep.subr.mxu0 0.0
        %476 = vmatpush1.xpose.msra.mxu0 0.0
        %477 = vmatprep.subr.mxu0 0.0
        %478 = vmatpush1.xpose.msra.mxu0 0.0
        %479 = vmatprep.subr.mxu0 0.0
        %480 = vmatpush1.xpose.msra.mxu0 0.0
        %481 = vmatprep.subr.mxu0 0.0
        %482 = vmatpush1.xpose.msra.mxu0 0.0
        %483 = vmatprep.subr.mxu0 0.0
        %484 = vmatpush1.xpose.msra.mxu0 0.0
        %485 = vmatprep.subr.mxu0 0.0
        %486 = vmatpush1.xpose.msra.mxu0 0.0
        %487 = vmatprep.subr.mxu0 0.0
        %488 = vmatpush1.xpose.msra.mxu0 0.0
        %489 = vmatprep.subr.mxu0 0.0
        %490 = vmatpush1.xpose.msra.mxu0 0.0
        %491 = vmatprep.subr.mxu0 0.0
        %492 = vmatpush1.xpose.msra.mxu0 0.0
        %493 = vmatprep.subr.mxu0 0.0
        %494 = vmatpush1.xpose.msra.mxu0 0.0
        %495 = vmatprep.subr.mxu0 0.0
        %496 = vmatpush1.xpose.msra.mxu0 0.0
        %497 = vmatprep.subr.mxu0 0.0
        %498 = vmatpush1.xpose.msra.mxu0 0.0
        %499 = vmatprep.subr.mxu0 0.0
        %500 = vmatpush1.xpose.msra.mxu0 0.0
        %501 = vmatprep.subr.mxu0 0.0
        %502 = vmatpush1.xpose.msra.mxu0 0.0
        %503 = vmatprep.subr.mxu0 0.0
        %504 = vmatpush1.xpose.msra.mxu0 0.0
        %505 = vmatprep.subr.mxu0 0.0
        %506 = vmatpush1.xpose.msra.mxu0 0.0
        %507 = vmatprep.subr.mxu0 0.0
        %508 = vmatpush1.xpose.msra.mxu0 0.0
        %509 = vmatprep.subr.mxu0 0.0
        %510 = vmatpush1.xpose.msra.mxu0 0.0
        %511 = vmatprep.subr.mxu0 0.0
        %512 = vmatpush1.xpose.msra.mxu0 0.0
        %513 = vmatprep.mubr.f32.mxu0 0.0
        %514 = vmatmul.mubr.f32.gmra.mrb[0].mxu0 %v438
        %v515 = vpop.f32.mrb[0].mxu0
        %v516 = vadd.f32 0.0, %v515
        %v517 = vpop.f32.mrb[0].mxu0
        %518 = vmatprep.mubr.f32.mxu0 0.0
        %519 = vmatmul.mubr.f32.gmra.mrb[0].mxu0 %v441
        %v520 = vpop.f32.mrb[0].mxu0
        %v521 = vadd.f32 0.0, %v520
        %v522 = vpop.f32.mrb[0].mxu0
        %523 = vdwg.mxu0
        %v524 = vxor.u32 %v516, 2147483648
        %v525 = vxor.u32 %v521, 2147483648
        %v526 = vmul.f32 %v524, 1.442695
        %v527 = vpow.pop %v526
        %v528 = vmul.f32 %v525, 1.442695
        %v529 = vpow.pop %v528
        %v530 = vadd.f32 %v527, 1.0
        %v531 = vadd.f32 %v529, 1.0
        %v532 = vrcp.pop %v530
        %v533 = vmul.f32 1.0, %v532
        %v534 = vrcp.pop %v531
        %v535 = vmul.f32 1.0, %v534
        %v536 = vadd.f32 %v533, 0.0
        %v537 = vadd.f32 %v535, 0.0
        %538 = vrot.lane.b32.xlu0 %v281, 126
        %v539 = vpop.permute.xlu0 %538
        %540 = vrot.lane.b32.xlu0 %v286, 126
        %v541 = vpop.permute.xlu0 %540
        %542 = vrot.lane.b32.xlu0 %v398, 126
        %v543 = vpop.permute.xlu0 %542
        %544 = vrot.lane.b32.xlu0 %v403, 126
        %v545 = vpop.permute.xlu0 %544
        %v546 = vsel %vm436, %v539, 0
        %v548 = vsel %vm436, %v541, 0
        %v550 = vsel %vm436, %v543, 0
        %v552 = vsel %vm436, %v545, 0
        %554 = vmatprep.subr.mxu0 0.0
        %555 = vmatpush1.xpose.msra.mxu0 %v550
        %556 = vmatprep.subr.mxu0 0.0
        %557 = vmatpush1.xpose.msra.mxu0 %v552
        %558 = vmatprep.subr.mxu0 0.0
        %559 = vmatpush1.xpose.msra.mxu0 0.0
        %560 = vmatprep.subr.mxu0 0.0
        %561 = vmatpush1.xpose.msra.mxu0 0.0
        %562 = vmatprep.subr.mxu0 0.0
        %563 = vmatpush1.xpose.msra.mxu0 0.0
        %564 = vmatprep.subr.mxu0 0.0
        %565 = vmatpush1.xpose.msra.mxu0 0.0
        %566 = vmatprep.subr.mxu0 0.0
        %567 = vmatpush1.xpose.msra.mxu0 0.0
        %568 = vmatprep.subr.mxu0 0.0
        %569 = vmatpush1.xpose.msra.mxu0 0.0
        %570 = vmatprep.subr.mxu0 0.0
        %571 = vmatpush1.xpose.msra.mxu0 0.0
        %572 = vmatprep.subr.mxu0 0.0
        %573 = vmatpush1.xpose.msra.mxu0 0.0
        %574 = vmatprep.subr.mxu0 0.0
        %575 = vmatpush1.xpose.msra.mxu0 0.0
        %576 = vmatprep.subr.mxu0 0.0
        %577 = vmatpush1.xpose.msra.mxu0 0.0
        %578 = vmatprep.subr.mxu0 0.0
        %579 = vmatpush1.xpose.msra.mxu0 0.0
        %580 = vmatprep.subr.mxu0 0.0
        %581 = vmatpush1.xpose.msra.mxu0 0.0
        %582 = vmatprep.subr.mxu0 0.0
        %583 = vmatpush1.xpose.msra.mxu0 0.0
        %584 = vmatprep.subr.mxu0 0.0
        %585 = vmatpush1.xpose.msra.mxu0 0.0
        %586 = vmatprep.subr.mxu0 0.0
        %587 = vmatpush1.xpose.msra.mxu0 0.0
        %588 = vmatprep.subr.mxu0 0.0
        %589 = vmatpush1.xpose.msra.mxu0 0.0
        %590 = vmatprep.subr.mxu0 0.0
        %591 = vmatpush1.xpose.msra.mxu0 0.0
        %592 = vmatprep.subr.mxu0 0.0
        %593 = vmatpush1.xpose.msra.mxu0 0.0
        %594 = vmatprep.subr.mxu0 0.0
        %595 = vmatpush1.xpose.msra.mxu0 0.0
        %596 = vmatprep.subr.mxu0 0.0
        %597 = vmatpush1.xpose.msra.mxu0 0.0
        %598 = vmatprep.subr.mxu0 0.0
        %599 = vmatpush1.xpose.msra.mxu0 0.0
        %600 = vmatprep.subr.mxu0 0.0
        %601 = vmatpush1.xpose.msra.mxu0 0.0
        %602 = vmatprep.subr.mxu0 0.0
        %603 = vmatpush1.xpose.msra.mxu0 0.0
        %604 = vmatprep.subr.mxu0 0.0
        %605 = vmatpush1.xpose.msra.mxu0 0.0
        %606 = vmatprep.subr.mxu0 0.0
        %607 = vmatpush1.xpose.msra.mxu0 0.0
        %608 = vmatprep.subr.mxu0 0.0
        %609 = vmatpush1.xpose.msra.mxu0 0.0
        %610 = vmatprep.subr.mxu0 0.0
        %611 = vmatpush1.xpose.msra.mxu0 0.0
        %612 = vmatprep.subr.mxu0 0.0
        %613 = vmatpush1.xpose.msra.mxu0 0.0
        %614 = vmatprep.subr.mxu0 0.0
        %615 = vmatpush1.xpose.msra.mxu0 0.0
        %616 = vmatprep.subr.mxu0 0.0
        %617 = vmatpush1.xpose.msra.mxu0 0.0
        %618 = vmatprep.mubr.f32.mxu0 0.0
        %619 = vmatmul.mubr.f32.gmra.mrb[0].mxu0 %v546
        %v620 = vpop.f32.mrb[0].mxu0
        %v621 = vadd.f32 0.0, %v620
        %v622 = vpop.f32.mrb[0].mxu0
        %623 = vmatprep.mubr.f32.mxu0 0.0
        %624 = vmatmul.mubr.f32.gmra.mrb[0].mxu0 %v548
        %v625 = vpop.f32.mrb[0].mxu0
        %v626 = vadd.f32 0.0, %v625
        %v627 = vpop.f32.mrb[0].mxu0
        %628 = vdwg.mxu0
        %v629 = vxor.u32 %v621, 2147483648
        %v630 = vxor.u32 %v626, 2147483648
        %v631 = vmul.f32 %v629, 1.442695
        %v632 = vpow.pop %v631
        %v633 = vmul.f32 %v630, 1.442695
        %v634 = vpow.pop %v633
        %v635 = vadd.f32 %v632, 1.0
        %v636 = vadd.f32 %v634, 1.0
        %v637 = vrcp.pop %v635
        %v638 = vmul.f32 1.0, %v637
        %v639 = vrcp.pop %v636
        %v640 = vmul.f32 1.0, %v639
        %v641 = vadd.f32 %v536, %v638
        %v642 = vadd.f32 %v537, %v640
        %643 = vrot.lane.b32.xlu0 %v281, 124
        %v644 = vpop.permute.xlu0 %643
        %645 = vrot.lane.b32.xlu0 %v286, 124
        %v646 = vpop.permute.xlu0 %645
        %647 = vrot.lane.b32.xlu0 %v398, 124
        %v648 = vpop.permute.xlu0 %647
        %649 = vrot.lane.b32.xlu0 %v403, 124
        %v650 = vpop.permute.xlu0 %649
        %v651 = vsel %vm436, %v644, 0
        %v653 = vsel %vm436, %v646, 0
        %v655 = vsel %vm436, %v648, 0
        %v657 = vsel %vm436, %v650, 0
        %659 = vmatprep.subr.mxu0 0.0
        %660 = vmatpush1.xpose.msra.mxu0 %v655
        %661 = vmatprep.subr.mxu0 0.0
        %662 = vmatpush1.xpose.msra.mxu0 %v657
        %663 = vmatprep.subr.mxu0 0.0
        %664 = vmatpush1.xpose.msra.mxu0 0.0
        %665 = vmatprep.subr.mxu0 0.0
        %666 = vmatpush1.xpose.msra.mxu0 0.0
        %667 = vmatprep.subr.mxu0 0.0
        %668 = vmatpush1.xpose.msra.mxu0 0.0
        %669 = vmatprep.subr.mxu0 0.0
        %670 = vmatpush1.xpose.msra.mxu0 0.0
        %671 = vmatprep.subr.mxu0 0.0
        %672 = vmatpush1.xpose.msra.mxu0 0.0
        %673 = vmatprep.subr.mxu0 0.0
        %674 = vmatpush1.xpose.msra.mxu0 0.0
        %675 = vmatprep.subr.mxu0 0.0
        %676 = vmatpush1.xpose.msra.mxu0 0.0
        %677 = vmatprep.subr.mxu0 0.0
        %678 = vmatpush1.xpose.msra.mxu0 0.0
        %679 = vmatprep.subr.mxu0 0.0
        %680 = vmatpush1.xpose.msra.mxu0 0.0
        %681 = vmatprep.subr.mxu0 0.0
        %682 = vmatpush1.xpose.msra.mxu0 0.0
        %683 = vmatprep.subr.mxu0 0.0
        %684 = vmatpush1.xpose.msra.mxu0 0.0
        %685 = vmatprep.subr.mxu0 0.0
        %686 = vmatpush1.xpose.msra.mxu0 0.0
        %687 = vmatprep.subr.mxu0 0.0
        %688 = vmatpush1.xpose.msra.mxu0 0.0
        %689 = vmatprep.subr.mxu0 0.0
        %690 = vmatpush1.xpose.msra.mxu0 0.0
        %691 = vmatprep.subr.mxu0 0.0
        %692 = vmatpush1.xpose.msra.mxu0 0.0
        %693 = vmatprep.subr.mxu0 0.0
        %694 = vmatpush1.xpose.msra.mxu0 0.0
        %695 = vmatprep.subr.mxu0 0.0
        %696 = vmatpush1.xpose.msra.mxu0 0.0
        %697 = vmatprep.subr.mxu0 0.0
        %698 = vmatpush1.xpose.msra.mxu0 0.0
        %699 = vmatprep.subr.mxu0 0.0
        %700 = vmatpush1.xpose.msra.mxu0 0.0
        %701 = vmatprep.subr.mxu0 0.0
        %702 = vmatpush1.xpose.msra.mxu0 0.0
        %703 = vmatprep.subr.mxu0 0.0
        %704 = vmatpush1.xpose.msra.mxu0 0.0
        %705 = vmatprep.subr.mxu0 0.0
        %706 = vmatpush1.xpose.msra.mxu0 0.0
        %707 = vmatprep.subr.mxu0 0.0
        %708 = vmatpush1.xpose.msra.mxu0 0.0
        %709 = vmatprep.subr.mxu0 0.0
        %710 = vmatpush1.xpose.msra.mxu0 0.0
        %711 = vmatprep.subr.mxu0 0.0
        %712 = vmatpush1.xpose.msra.mxu0 0.0
        %713 = vmatprep.subr.mxu0 0.0
        %714 = vmatpush1.xpose.msra.mxu0 0.0
        %715 = vmatprep.subr.mxu0 0.0
        %716 = vmatpush1.xpose.msra.mxu0 0.0
        %717 = vmatprep.subr.mxu0 0.0
        %718 = vmatpush1.xpose.msra.mxu0 0.0
        %719 = vmatprep.subr.mxu0 0.0
        %720 = vmatpush1.xpose.msra.mxu0 0.0
        %721 = vmatprep.subr.mxu0 0.0
        %722 = vmatpush1.xpose.msra.mxu0 0.0
        %723 = vmatprep.mubr.f32.mxu0 0.0
        %724 = vmatmul.mubr.f32.gmra.mrb[0].mxu0 %v651
        %v725 = vpop.f32.mrb[0].mxu0
        %v726 = vadd.f32 0.0, %v725
        %v727 = vpop.f32.mrb[0].mxu0
        %728 = vmatprep.mubr.f32.mxu0 0.0
        %729 = vmatmul.mubr.f32.gmra.mrb[0].mxu0 %v653
        %v730 = vpop.f32.mrb[0].mxu0
        %v731 = vadd.f32 0.0, %v730
        %v732 = vpop.f32.mrb[0].mxu0
        %733 = vdwg.mxu0
        %v734 = vxor.u32 %v726, 2147483648
        %v735 = vxor.u32 %v731, 2147483648
        %v736 = vmul.f32 %v734, 1.442695
        %v737 = vpow.pop %v736
        %v738 = vmul.f32 %v735, 1.442695
        %v739 = vpow.pop %v738
        %v740 = vadd.f32 %v737, 1.0
        %v741 = vadd.f32 %v739, 1.0
        %v742 = vrcp.pop %v740
        %v743 = vmul.f32 1.0, %v742
        %v744 = vrcp.pop %v741
        %v745 = vmul.f32 1.0, %v744
        %v746 = vadd.f32 %v641, %v743
        %v747 = vadd.f32 %v642, %v745
        %748 = vrot.lane.b32.xlu0 %v281, 122
        %v749 = vpop.permute.xlu0 %748
        %750 = vrot.lane.b32.xlu0 %v286, 122
        %v751 = vpop.permute.xlu0 %750
        %752 = vrot.lane.b32.xlu0 %v398, 122
        %v753 = vpop.permute.xlu0 %752
        %754 = vrot.lane.b32.xlu0 %v403, 122
        %v755 = vpop.permute.xlu0 %754
        %v756 = vsel %vm436, %v749, 0
        %v758 = vsel %vm436, %v751, 0
        %v760 = vsel %vm436, %v753, 0
        %v762 = vsel %vm436, %v755, 0
        %764 = vmatprep.subr.mxu0 0.0
        %765 = vmatpush1.xpose.msra.mxu0 %v760
        %766 = vmatprep.subr.mxu0 0.0
        %767 = vmatpush1.xpose.msra.mxu0 %v762
        %768 = vmatprep.subr.mxu0 0.0
        %769 = vmatpush1.xpose.msra.mxu0 0.0
        %770 = vmatprep.subr.mxu0 0.0
        %771 = vmatpush1.xpose.msra.mxu0 0.0
        %772 = vmatprep.subr.mxu0 0.0
        %773 = vmatpush1.xpose.msra.mxu0 0.0
        %774 = vmatprep.subr.mxu0 0.0
        %775 = vmatpush1.xpose.msra.mxu0 0.0
        %776 = vmatprep.subr.mxu0 0.0
        %777 = vmatpush1.xpose.msra.mxu0 0.0
        %778 = vmatprep.subr.mxu0 0.0
        %779 = vmatpush1.xpose.msra.mxu0 0.0
        %780 = vmatprep.subr.mxu0 0.0
        %781 = vmatpush1.xpose.msra.mxu0 0.0
        %782 = vmatprep.subr.mxu0 0.0
        %783 = vmatpush1.xpose.msra.mxu0 0.0
        %784 = vmatprep.subr.mxu0 0.0
        %785 = vmatpush1.xpose.msra.mxu0 0.0
        %786 = vmatprep.subr.mxu0 0.0
        %787 = vmatpush1.xpose.msra.mxu0 0.0
        %788 = vmatprep.subr.mxu0 0.0
        %789 = vmatpush1.xpose.msra.mxu0 0.0
        %790 = vmatprep.subr.mxu0 0.0
        %791 = vmatpush1.xpose.msra.mxu0 0.0
        %792 = vmatprep.subr.mxu0 0.0
        %793 = vmatpush1.xpose.msra.mxu0 0.0
        %794 = vmatprep.subr.mxu0 0.0
        %795 = vmatpush1.xpose.msra.mxu0 0.0
        %796 = vmatprep.subr.mxu0 0.0
        %797 = vmatpush1.xpose.msra.mxu0 0.0
        %798 = vmatprep.subr.mxu0 0.0
        %799 = vmatpush1.xpose.msra.mxu0 0.0
        %800 = vmatprep.subr.mxu0 0.0
        %801 = vmatpush1.xpose.msra.mxu0 0.0
        %802 = vmatprep.subr.mxu0 0.0
        %803 = vmatpush1.xpose.msra.mxu0 0.0
        %804 = vmatprep.subr.mxu0 0.0
        %805 = vmatpush1.xpose.msra.mxu0 0.0
        %806 = vmatprep.subr.mxu0 0.0
        %807 = vmatpush1.xpose.msra.mxu0 0.0
        %808 = vmatprep.subr.mxu0 0.0
        %809 = vmatpush1.xpose.msra.mxu0 0.0
        %810 = vmatprep.subr.mxu0 0.0
        %811 = vmatpush1.xpose.msra.mxu0 0.0
        %812 = vmatprep.subr.mxu0 0.0
        %813 = vmatpush1.xpose.msra.mxu0 0.0
        %814 = vmatprep.subr.mxu0 0.0
        %815 = vmatpush1.xpose.msra.mxu0 0.0
        %816 = vmatprep.subr.mxu0 0.0
        %817 = vmatpush1.xpose.msra.mxu0 0.0
        %818 = vmatprep.subr.mxu0 0.0
        %819 = vmatpush1.xpose.msra.mxu0 0.0
        %820 = vmatprep.subr.mxu0 0.0
        %821 = vmatpush1.xpose.msra.mxu0 0.0
        %822 = vmatprep.subr.mxu0 0.0
        %823 = vmatpush1.xpose.msra.mxu0 0.0
        %824 = vmatprep.subr.mxu0 0.0
        %825 = vmatpush1.xpose.msra.mxu0 0.0
        %826 = vmatprep.subr.mxu0 0.0
        %827 = vmatpush1.xpose.msra.mxu0 0.0
        %828 = vmatprep.mubr.f32.mxu0 0.0
        %829 = vmatmul.mubr.f32.gmra.mrb[0].mxu0 %v756
        %v830 = vpop.f32.mrb[0].mxu0
        %v831 = vadd.f32 0.0, %v830
        %v832 = vpop.f32.mrb[0].mxu0
        %833 = vmatprep.mubr.f32.mxu0 0.0
        %834 = vmatmul.mubr.f32.gmra.mrb[0].mxu0 %v758
        %v835 = vpop.f32.mrb[0].mxu0
        %v836 = vadd.f32 0.0, %v835
        %v837 = vpop.f32.mrb[0].mxu0
        %838 = vdwg.mxu0
        %v839 = vxor.u32 %v831, 2147483648
        %v840 = vxor.u32 %v836, 2147483648
        %v841 = vmul.f32 %v839, 1.442695
        %v842 = vpow.pop %v841
        %v843 = vmul.f32 %v840, 1.442695
        %v844 = vpow.pop %v843
        %v845 = vadd.f32 %v842, 1.0
        %v846 = vadd.f32 %v844, 1.0
        %v847 = vrcp.pop %v845
        %v848 = vmul.f32 1.0, %v847
        %v849 = vrcp.pop %v846
        %v850 = vmul.f32 1.0, %v849
        %v851 = vadd.f32 %v746, %v848
        %v852 = vadd.f32 %v747, %v850
        %v853 = vmul.f32 %v851, 0.25
        %v854 = vmul.f32 %v852, 0.25
        %vm855 = vcmask 130048
        %856 = vst.msk [vmem:[%s163] sm:$0xff] %vm855, %v853
        %857 = vst.msk [vmem:[%s163 + $0x8] sm:$0xff] %vm855, %v854
        %v859 = vsel %vm436, %v291, 0
        %v862 = vsel %vm436, %v296, 0
        %v865 = vsel %vm436, %v408, 0
        %v868 = vsel %vm436, %v413, 0
        %870 = vmatprep.subr.mxu0 0.0
        %871 = vmatpush1.xpose.msra.mxu0 %v865
        %872 = vmatprep.subr.mxu0 0.0
        %873 = vmatpush1.xpose.msra.mxu0 %v868
        %874 = vmatprep.subr.mxu0 0.0
        %875 = vmatpush1.xpose.msra.mxu0 0.0
        %876 = vmatprep.subr.mxu0 0.0
        %877 = vmatpush1.xpose.msra.mxu0 0.0
        %878 = vmatprep.subr.mxu0 0.0
        %879 = vmatpush1.xpose.msra.mxu0 0.0
        %880 = vmatprep.subr.mxu0 0.0
        %881 = vmatpush1.xpose.msra.mxu0 0.0
        %882 = vmatprep.subr.mxu0 0.0
        %883 = vmatpush1.xpose.msra.mxu0 0.0
        %884 = vmatprep.subr.mxu0 0.0
        %885 = vmatpush1.xpose.msra.mxu0 0.0
        %886 = vmatprep.subr.mxu0 0.0
        %887 = vmatpush1.xpose.msra.mxu0 0.0
        %888 = vmatprep.subr.mxu0 0.0
        %889 = vmatpush1.xpose.msra.mxu0 0.0
        %890 = vmatprep.subr.mxu0 0.0
        %891 = vmatpush1.xpose.msra.mxu0 0.0
        %892 = vmatprep.subr.mxu0 0.0
        %893 = vmatpush1.xpose.msra.mxu0 0.0
        %894 = vmatprep.subr.mxu0 0.0
        %895 = vmatpush1.xpose.msra.mxu0 0.0
        %896 = vmatprep.subr.mxu0 0.0
        %897 = vmatpush1.xpose.msra.mxu0 0.0
        %898 = vmatprep.subr.mxu0 0.0
        %899 = vmatpush1.xpose.msra.mxu0 0.0
        %900 = vmatprep.subr.mxu0 0.0
        %901 = vmatpush1.xpose.msra.mxu0 0.0
        %902 = vmatprep.subr.mxu0 0.0
        %903 = vmatpush1.xpose.msra.mxu0 0.0
        %904 = vmatprep.subr.mxu0 0.0
        %905 = vmatpush1.xpose.msra.mxu0 0.0
        %906 = vmatprep.subr.mxu0 0.0
        %907 = vmatpush1.xpose.msra.mxu0 0.0
        %908 = vmatprep.subr.mxu0 0.0
        %909 = vmatpush1.xpose.msra.mxu0 0.0
        %910 = vmatprep.subr.mxu0 0.0
        %911 = vmatpush1.xpose.msra.mxu0 0.0
        %912 = vmatprep.subr.mxu0 0.0
        %913 = vmatpush1.xpose.msra.mxu0 0.0
        %914 = vmatprep.subr.mxu0 0.0
        %915 = vmatpush1.xpose.msra.mxu0 0.0
        %916 = vmatprep.subr.mxu0 0.0
        %917 = vmatpush1.xpose.msra.mxu0 0.0
        %918 = vmatprep.subr.mxu0 0.0
        %919 = vmatpush1.xpose.msra.mxu0 0.0
        %920 = vmatprep.subr.mxu0 0.0
        %921 = vmatpush1.xpose.msra.mxu0 0.0
        %922 = vmatprep.subr.mxu0 0.0
        %923 = vmatpush1.xpose.msra.mxu0 0.0
        %924 = vmatprep.subr.mxu0 0.0
        %925 = vmatpush1.xpose.msra.mxu0 0.0
        %926 = vmatprep.subr.mxu0 0.0
        %927 = vmatpush1.xpose.msra.mxu0 0.0
        %928 = vmatprep.subr.mxu0 0.0
        %929 = vmatpush1.xpose.msra.mxu0 0.0
        %930 = vmatprep.subr.mxu0 0.0
        %931 = vmatpush1.xpose.msra.mxu0 0.0
        %932 = vmatprep.subr.mxu0 0.0
        %933 = vmatpush1.xpose.msra.mxu0 0.0
        %934 = vmatprep.mubr.f32.mxu0 0.0
        %935 = vmatmul.mubr.f32.gmra.mrb[0].mxu0 %v859
        %v936 = vpop.f32.mrb[0].mxu0
        %v937 = vadd.f32 0.0, %v936
        %v938 = vpop.f32.mrb[0].mxu0
        %939 = vmatprep.mubr.f32.mxu0 0.0
        %940 = vmatmul.mubr.f32.gmra.mrb[0].mxu0 %v862
        %v941 = vpop.f32.mrb[0].mxu0
        %v942 = vadd.f32 0.0, %v941
        %v943 = vpop.f32.mrb[0].mxu0
        %944 = vdwg.mxu0
        %v945 = vxor.u32 %v937, 2147483648
        %v946 = vxor.u32 %v942, 2147483648
        %v947 = vmul.f32 %v945, 1.442695
        %v948 = vpow.pop %v947
        %v949 = vmul.f32 %v946, 1.442695
        %v950 = vpow.pop %v949
        %v951 = vadd.f32 %v948, 1.0
        %v952 = vadd.f32 %v950, 1.0
        %v953 = vrcp.pop %v951
        %v954 = vmul.f32 1.0, %v953
        %v955 = vrcp.pop %v952
        %v956 = vmul.f32 1.0, %v955
        %v957 = vadd.f32 %v954, 0.0
        %v958 = vadd.f32 %v956, 0.0
        %959 = vrot.lane.b32.xlu0 %v291, 126
        %v960 = vpop.permute.xlu0 %959
        %961 = vrot.lane.b32.xlu0 %v296, 126
        %v962 = vpop.permute.xlu0 %961
        %963 = vrot.lane.b32.xlu0 %v408, 126
        %v964 = vpop.permute.xlu0 %963
        %965 = vrot.lane.b32.xlu0 %v413, 126
        %v966 = vpop.permute.xlu0 %965
        %v967 = vsel %vm436, %v960, 0
        %v969 = vsel %vm436, %v962, 0
        %v971 = vsel %vm436, %v964, 0
        %v973 = vsel %vm436, %v966, 0
        %975 = vmatprep.subr.mxu0 0.0
        %976 = vmatpush1.xpose.msra.mxu0 %v971
        %977 = vmatprep.subr.mxu0 0.0
        %978 = vmatpush1.xpose.msra.mxu0 %v973
        %979 = vmatprep.subr.mxu0 0.0
        %980 = vmatpush1.xpose.msra.mxu0 0.0
        %981 = vmatprep.subr.mxu0 0.0
        %982 = vmatpush1.xpose.msra.mxu0 0.0
        %983 = vmatprep.subr.mxu0 0.0
        %984 = vmatpush1.xpose.msra.mxu0 0.0
        %985 = vmatprep.subr.mxu0 0.0
        %986 = vmatpush1.xpose.msra.mxu0 0.0
        %987 = vmatprep.subr.mxu0 0.0
        %988 = vmatpush1.xpose.msra.mxu0 0.0
        %989 = vmatprep.subr.mxu0 0.0
        %990 = vmatpush1.xpose.msra.mxu0 0.0
        %991 = vmatprep.subr.mxu0 0.0
        %992 = vmatpush1.xpose.msra.mxu0 0.0
        %993 = vmatprep.subr.mxu0 0.0
        %994 = vmatpush1.xpose.msra.mxu0 0.0
        %995 = vmatprep.subr.mxu0 0.0
        %996 = vmatpush1.xpose.msra.mxu0 0.0
        %997 = vmatprep.subr.mxu0 0.0
        %998 = vmatpush1.xpose.msra.mxu0 0.0
        %999 = vmatprep.subr.mxu0 0.0
        %1000 = vmatpush1.xpose.msra.mxu0 0.0
        %1001 = vmatprep.subr.mxu0 0.0
        %1002 = vmatpush1.xpose.msra.mxu0 0.0
        %1003 = vmatprep.subr.mxu0 0.0
        %1004 = vmatpush1.xpose.msra.mxu0 0.0
        %1005 = vmatprep.subr.mxu0 0.0
        %1006 = vmatpush1.xpose.msra.mxu0 0.0
        %1007 = vmatprep.subr.mxu0 0.0
        %1008 = vmatpush1.xpose.msra.mxu0 0.0
        %1009 = vmatprep.subr.mxu0 0.0
        %1010 = vmatpush1.xpose.msra.mxu0 0.0
        %1011 = vmatprep.subr.mxu0 0.0
        %1012 = vmatpush1.xpose.msra.mxu0 0.0
        %1013 = vmatprep.subr.mxu0 0.0
        %1014 = vmatpush1.xpose.msra.mxu0 0.0
        %1015 = vmatprep.subr.mxu0 0.0
        %1016 = vmatpush1.xpose.msra.mxu0 0.0
        %1017 = vmatprep.subr.mxu0 0.0
        %1018 = vmatpush1.xpose.msra.mxu0 0.0
        %1019 = vmatprep.subr.mxu0 0.0
        %1020 = vmatpush1.xpose.msra.mxu0 0.0
        %1021 = vmatprep.subr.mxu0 0.0
        %1022 = vmatpush1.xpose.msra.mxu0 0.0
        %1023 = vmatprep.subr.mxu0 0.0
        %1024 = vmatpush1.xpose.msra.mxu0 0.0
        %1025 = vmatprep.subr.mxu0 0.0
        %1026 = vmatpush1.xpose.msra.mxu0 0.0
        %1027 = vmatprep.subr.mxu0 0.0
        %1028 = vmatpush1.xpose.msra.mxu0 0.0
        %1029 = vmatprep.subr.mxu0 0.0
        %1030 = vmatpush1.xpose.msra.mxu0 0.0
        %1031 = vmatprep.subr.mxu0 0.0
        %1032 = vmatpush1.xpose.msra.mxu0 0.0
        %1033 = vmatprep.subr.mxu0 0.0
        %1034 = vmatpush1.xpose.msra.mxu0 0.0
        %1035 = vmatprep.subr.mxu0 0.0
        %1036 = vmatpush1.xpose.msra.mxu0 0.0
        %1037 = vmatprep.subr.mxu0 0.0
        %1038 = vmatpush1.xpose.msra.mxu0 0.0
        %1039 = vmatprep.mubr.f32.mxu0 0.0
        %1040 = vmatmul.mubr.f32.gmra.mrb[0].mxu0 %v967
        %v1041 = vpop.f32.mrb[0].mxu0
        %v1042 = vadd.f32 0.0, %v1041
        %v1043 = vpop.f32.mrb[0].mxu0
        %1044 = vmatprep.mubr.f32.mxu0 0.0
        %1045 = vmatmul.mubr.f32.gmra.mrb[0].mxu0 %v969
        %v1046 = vpop.f32.mrb[0].mxu0
        %v1047 = vadd.f32 0.0, %v1046
        %v1048 = vpop.f32.mrb[0].mxu0
        %1049 = vdwg.mxu0
        %v1050 = vxor.u32 %v1042, 2147483648
        %v1051 = vxor.u32 %v1047, 2147483648
        %v1052 = vmul.f32 %v1050, 1.442695
        %v1053 = vpow.pop %v1052
        %v1054 = vmul.f32 %v1051, 1.442695
        %v1055 = vpow.pop %v1054
        %v1056 = vadd.f32 %v1053, 1.0
        %v1057 = vadd.f32 %v1055, 1.0
        %v1058 = vrcp.pop %v1056
        %v1059 = vmul.f32 1.0, %v1058
        %v1060 = vrcp.pop %v1057
        %v1061 = vmul.f32 1.0, %v1060
        %v1062 = vadd.f32 %v957, %v1059
        %v1063 = vadd.f32 %v958, %v1061
        %1064 = vrot.lane.b32.xlu0 %v291, 124
        %v1065 = vpop.permute.xlu0 %1064
        %1066 = vrot.lane.b32.xlu0 %v296, 124
        %v1067 = vpop.permute.xlu0 %1066
        %1068 = vrot.lane.b32.xlu0 %v408, 124
        %v1069 = vpop.permute.xlu0 %1068
        %1070 = vrot.lane.b32.xlu0 %v413, 124
        %v1071 = vpop.permute.xlu0 %1070
        %v1072 = vsel %vm436, %v1065, 0
        %v1074 = vsel %vm436, %v1067, 0
        %v1076 = vsel %vm436, %v1069, 0
        %v1078 = vsel %vm436, %v1071, 0
        %1080 = vmatprep.subr.mxu0 0.0
        %1081 = vmatpush1.xpose.msra.mxu0 %v1076
        %1082 = vmatprep.subr.mxu0 0.0
        %1083 = vmatpush1.xpose.msra.mxu0 %v1078
        %1084 = vmatprep.subr.mxu0 0.0
        %1085 = vmatpush1.xpose.msra.mxu0 0.0
        %1086 = vmatprep.subr.mxu0 0.0
        %1087 = vmatpush1.xpose.msra.mxu0 0.0
        %1088 = vmatprep.subr.mxu0 0.0
        %1089 = vmatpush1.xpose.msra.mxu0 0.0
        %1090 = vmatprep.subr.mxu0 0.0
        %1091 = vmatpush1.xpose.msra.mxu0 0.0
        %1092 = vmatprep.subr.mxu0 0.0
        %1093 = vmatpush1.xpose.msra.mxu0 0.0
        %1094 = vmatprep.subr.mxu0 0.0
        %1095 = vmatpush1.xpose.msra.mxu0 0.0
        %1096 = vmatprep.subr.mxu0 0.0
        %1097 = vmatpush1.xpose.msra.mxu0 0.0
        %1098 = vmatprep.subr.mxu0 0.0
        %1099 = vmatpush1.xpose.msra.mxu0 0.0
        %1100 = vmatprep.subr.mxu0 0.0
        %1101 = vmatpush1.xpose.msra.mxu0 0.0
        %1102 = vmatprep.subr.mxu0 0.0
        %1103 = vmatpush1.xpose.msra.mxu0 0.0
        %1104 = vmatprep.subr.mxu0 0.0
        %1105 = vmatpush1.xpose.msra.mxu0 0.0
        %1106 = vmatprep.subr.mxu0 0.0
        %1107 = vmatpush1.xpose.msra.mxu0 0.0
        %1108 = vmatprep.subr.mxu0 0.0
        %1109 = vmatpush1.xpose.msra.mxu0 0.0
        %1110 = vmatprep.subr.mxu0 0.0
        %1111 = vmatpush1.xpose.msra.mxu0 0.0
        %1112 = vmatprep.subr.mxu0 0.0
        %1113 = vmatpush1.xpose.msra.mxu0 0.0
        %1114 = vmatprep.subr.mxu0 0.0
        %1115 = vmatpush1.xpose.msra.mxu0 0.0
        %1116 = vmatprep.subr.mxu0 0.0
        %1117 = vmatpush1.xpose.msra.mxu0 0.0
        %1118 = vmatprep.subr.mxu0 0.0
        %1119 = vmatpush1.xpose.msra.mxu0 0.0
        %1120 = vmatprep.subr.mxu0 0.0
        %1121 = vmatpush1.xpose.msra.mxu0 0.0
        %1122 = vmatprep.subr.mxu0 0.0
        %1123 = vmatpush1.xpose.msra.mxu0 0.0
        %1124 = vmatprep.subr.mxu0 0.0
        %1125 = vmatpush1.xpose.msra.mxu0 0.0
        %1126 = vmatprep.subr.mxu0 0.0
        %1127 = vmatpush1.xpose.msra.mxu0 0.0
        %1128 = vmatprep.subr.mxu0 0.0
        %1129 = vmatpush1.xpose.msra.mxu0 0.0
        %1130 = vmatprep.subr.mxu0 0.0
        %1131 = vmatpush1.xpose.msra.mxu0 0.0
        %1132 = vmatprep.subr.mxu0 0.0
        %1133 = vmatpush1.xpose.msra.mxu0 0.0
        %1134 = vmatprep.subr.mxu0 0.0
        %1135 = vmatpush1.xpose.msra.mxu0 0.0
        %1136 = vmatprep.subr.mxu0 0.0
        %1137 = vmatpush1.xpose.msra.mxu0 0.0
        %1138 = vmatprep.subr.mxu0 0.0
        %1139 = vmatpush1.xpose.msra.mxu0 0.0
        %1140 = vmatprep.subr.mxu0 0.0
        %1141 = vmatpush1.xpose.msra.mxu0 0.0
        %1142 = vmatprep.subr.mxu0 0.0
        %1143 = vmatpush1.xpose.msra.mxu0 0.0
        %1144 = vmatprep.mubr.f32.mxu0 0.0
        %1145 = vmatmul.mubr.f32.gmra.mrb[0].mxu0 %v1072
        %v1146 = vpop.f32.mrb[0].mxu0
        %v1147 = vadd.f32 0.0, %v1146
        %v1148 = vpop.f32.mrb[0].mxu0
        %1149 = vmatprep.mubr.f32.mxu0 0.0
        %1150 = vmatmul.mubr.f32.gmra.mrb[0].mxu0 %v1074
        %v1151 = vpop.f32.mrb[0].mxu0
        %v1152 = vadd.f32 0.0, %v1151
        %v1153 = vpop.f32.mrb[0].mxu0
        %1154 = vdwg.mxu0
        %v1155 = vxor.u32 %v1147, 2147483648
        %v1156 = vxor.u32 %v1152, 2147483648
        %v1157 = vmul.f32 %v1155, 1.442695
        %v1158 = vpow.pop %v1157
        %v1159 = vmul.f32 %v1156, 1.442695
        %v1160 = vpow.pop %v1159
        %v1161 = vadd.f32 %v1158, 1.0
        %v1162 = vadd.f32 %v1160, 1.0
        %v1163 = vrcp.pop %v1161
        %v1164 = vmul.f32 1.0, %v1163
        %v1165 = vrcp.pop %v1162
        %v1166 = vmul.f32 1.0, %v1165
        %v1167 = vadd.f32 %v1062, %v1164
        %v1168 = vadd.f32 %v1063, %v1166
        %1169 = vrot.lane.b32.xlu0 %v291, 122
        %v1170 = vpop.permute.xlu0 %1169
        %1171 = vrot.lane.b32.xlu0 %v296, 122
        %v1172 = vpop.permute.xlu0 %1171
        %1173 = vrot.lane.b32.xlu0 %v408, 122
        %v1174 = vpop.permute.xlu0 %1173
        %1175 = vrot.lane.b32.xlu0 %v413, 122
        %v1176 = vpop.permute.xlu0 %1175
        %v1177 = vsel %vm436, %v1170, 0
        %v1179 = vsel %vm436, %v1172, 0
        %v1181 = vsel %vm436, %v1174, 0
        %v1183 = vsel %vm436, %v1176, 0
        %1185 = vmatprep.subr.mxu0 0.0
        %1186 = vmatpush1.xpose.msra.mxu0 %v1181
        %1187 = vmatprep.subr.mxu0 0.0
        %1188 = vmatpush1.xpose.msra.mxu0 %v1183
        %1189 = vmatprep.subr.mxu0 0.0
        %1190 = vmatpush1.xpose.msra.mxu0 0.0
        %1191 = vmatprep.subr.mxu0 0.0
        %1192 = vmatpush1.xpose.msra.mxu0 0.0
        %1193 = vmatprep.subr.mxu0 0.0
        %1194 = vmatpush1.xpose.msra.mxu0 0.0
        %1195 = vmatprep.subr.mxu0 0.0
        %1196 = vmatpush1.xpose.msra.mxu0 0.0
        %1197 = vmatprep.subr.mxu0 0.0
        %1198 = vmatpush1.xpose.msra.mxu0 0.0
        %1199 = vmatprep.subr.mxu0 0.0
        %1200 = vmatpush1.xpose.msra.mxu0 0.0
        %1201 = vmatprep.subr.mxu0 0.0
        %1202 = vmatpush1.xpose.msra.mxu0 0.0
        %1203 = vmatprep.subr.mxu0 0.0
        %1204 = vmatpush1.xpose.msra.mxu0 0.0
        %1205 = vmatprep.subr.mxu0 0.0
        %1206 = vmatpush1.xpose.msra.mxu0 0.0
        %1207 = vmatprep.subr.mxu0 0.0
        %1208 = vmatpush1.xpose.msra.mxu0 0.0
        %1209 = vmatprep.subr.mxu0 0.0
        %1210 = vmatpush1.xpose.msra.mxu0 0.0
        %1211 = vmatprep.subr.mxu0 0.0
        %1212 = vmatpush1.xpose.msra.mxu0 0.0
        %1213 = vmatprep.subr.mxu0 0.0
        %1214 = vmatpush1.xpose.msra.mxu0 0.0
        %1215 = vmatprep.subr.mxu0 0.0
        %1216 = vmatpush1.xpose.msra.mxu0 0.0
        %1217 = vmatprep.subr.mxu0 0.0
        %1218 = vmatpush1.xpose.msra.mxu0 0.0
        %1219 = vmatprep.subr.mxu0 0.0
        %1220 = vmatpush1.xpose.msra.mxu0 0.0
        %1221 = vmatprep.subr.mxu0 0.0
        %1222 = vmatpush1.xpose.msra.mxu0 0.0
        %1223 = vmatprep.subr.mxu0 0.0
        %1224 = vmatpush1.xpose.msra.mxu0 0.0
        %1225 = vmatprep.subr.mxu0 0.0
        %1226 = vmatpush1.xpose.msra.mxu0 0.0
        %1227 = vmatprep.subr.mxu0 0.0
        %1228 = vmatpush1.xpose.msra.mxu0 0.0
        %1229 = vmatprep.subr.mxu0 0.0
        %1230 = vmatpush1.xpose.msra.mxu0 0.0
        %1231 = vmatprep.subr.mxu0 0.0
        %1232 = vmatpush1.xpose.msra.mxu0 0.0
        %1233 = vmatprep.subr.mxu0 0.0
        %1234 = vmatpush1.xpose.msra.mxu0 0.0
        %1235 = vmatprep.subr.mxu0 0.0
        %1236 = vmatpush1.xpose.msra.mxu0 0.0
        %1237 = vmatprep.subr.mxu0 0.0
        %1238 = vmatpush1.xpose.msra.mxu0 0.0
        %1239 = vmatprep.subr.mxu0 0.0
        %1240 = vmatpush1.xpose.msra.mxu0 0.0
        %1241 = vmatprep.subr.mxu0 0.0
        %1242 = vmatpush1.xpose.msra.mxu0 0.0
        %1243 = vmatprep.subr.mxu0 0.0
        %1244 = vmatpush1.xpose.msra.mxu0 0.0
        %1245 = vmatprep.subr.mxu0 0.0
        %1246 = vmatpush1.xpose.msra.mxu0 0.0
        %1247 = vmatprep.subr.mxu0 0.0
        %1248 = vmatpush1.xpose.msra.mxu0 0.0
        %1249 = vmatprep.mubr.f32.mxu0 0.0
        %1250 = vmatmul.mubr.f32.gmra.mrb[0].mxu0 %v1177
        %v1251 = vpop.f32.mrb[0].mxu0
        %v1252 = vadd.f32 0.0, %v1251
        %v1253 = vpop.f32.mrb[0].mxu0
        %1254 = vmatprep.mubr.f32.mxu0 0.0
        %1255 = vmatmul.mubr.f32.gmra.mrb[0].mxu0 %v1179
        %v1256 = vpop.f32.mrb[0].mxu0
        %v1257 = vadd.f32 0.0, %v1256
        %v1258 = vpop.f32.mrb[0].mxu0
        %1259 = vdwg.mxu0
        %v1260 = vxor.u32 %v1252, 2147483648
        %v1261 = vxor.u32 %v1257, 2147483648
        %v1262 = vmul.f32 %v1260, 1.442695
        %v1263 = vpow.pop %v1262
        %v1264 = vmul.f32 %v1261, 1.442695
        %v1265 = vpow.pop %v1264
        %v1266 = vadd.f32 %v1263, 1.0
        %v1267 = vadd.f32 %v1265, 1.0
        %v1268 = vrcp.pop %v1266
        %v1269 = vmul.f32 1.0, %v1268
        %v1270 = vrcp.pop %v1267
        %v1271 = vmul.f32 1.0, %v1270
        %v1272 = vadd.f32 %v1167, %v1269
        %v1273 = vadd.f32 %v1168, %v1271
        %v1274 = vmul.f32 %v1272, 0.25
        %v1275 = vmul.f32 %v1273, 0.25
        %s1276 = scalar_lea.vmem %s163, 16 [#allocation2]
        %1277 = vst.msk [vmem:[%s1276] sm:$0xff] %vm855, %v1274
        %1278 = vst.msk [vmem:[%s1276 + $0x8] sm:$0xff] %vm855, %v1275
        %v1280 = vsel %vm436, %v301, 0
        %v1283 = vsel %vm436, %v306, 0
        %v1286 = vsel %vm436, %v418, 0
        %v1289 = vsel %vm436, %v423, 0
        %1291 = vmatprep.subr.mxu0 0.0
        %1292 = vmatpush1.xpose.msra.mxu0 %v1286
        %1293 = vmatprep.subr.mxu0 0.0
        %1294 = vmatpush1.xpose.msra.mxu0 %v1289
        %1295 = vmatprep.subr.mxu0 0.0
        %1296 = vmatpush1.xpose.msra.mxu0 0.0
        %1297 = vmatprep.subr.mxu0 0.0
        %1298 = vmatpush1.xpose.msra.mxu0 0.0
        %1299 = vmatprep.subr.mxu0 0.0
        %1300 = vmatpush1.xpose.msra.mxu0 0.0
        %1301 = vmatprep.subr.mxu0 0.0
        %1302 = vmatpush1.xpose.msra.mxu0 0.0
        %1303 = vmatprep.subr.mxu0 0.0
        %1304 = vmatpush1.xpose.msra.mxu0 0.0
        %1305 = vmatprep.subr.mxu0 0.0
        %1306 = vmatpush1.xpose.msra.mxu0 0.0
        %1307 = vmatprep.subr.mxu0 0.0
        %1308 = vmatpush1.xpose.msra.mxu0 0.0
        %1309 = vmatprep.subr.mxu0 0.0
        %1310 = vmatpush1.xpose.msra.mxu0 0.0
        %1311 = vmatprep.subr.mxu0 0.0
        %1312 = vmatpush1.xpose.msra.mxu0 0.0
        %1313 = vmatprep.subr.mxu0 0.0
        %1314 = vmatpush1.xpose.msra.mxu0 0.0
        %1315 = vmatprep.subr.mxu0 0.0
        %1316 = vmatpush1.xpose.msra.mxu0 0.0
        %1317 = vmatprep.subr.mxu0 0.0
        %1318 = vmatpush1.xpose.msra.mxu0 0.0
        %1319 = vmatprep.subr.mxu0 0.0
        %1320 = vmatpush1.xpose.msra.mxu0 0.0
        %1321 = vmatprep.subr.mxu0 0.0
        %1322 = vmatpush1.xpose.msra.mxu0 0.0
        %1323 = vmatprep.subr.mxu0 0.0
        %1324 = vmatpush1.xpose.msra.mxu0 0.0
        %1325 = vmatprep.subr.mxu0 0.0
        %1326 = vmatpush1.xpose.msra.mxu0 0.0
        %1327 = vmatprep.subr.mxu0 0.0
        %1328 = vmatpush1.xpose.msra.mxu0 0.0
        %1329 = vmatprep.subr.mxu0 0.0
        %1330 = vmatpush1.xpose.msra.mxu0 0.0
        %1331 = vmatprep.subr.mxu0 0.0
        %1332 = vmatpush1.xpose.msra.mxu0 0.0
        %1333 = vmatprep.subr.mxu0 0.0
        %1334 = vmatpush1.xpose.msra.mxu0 0.0
        %1335 = vmatprep.subr.mxu0 0.0
        %1336 = vmatpush1.xpose.msra.mxu0 0.0
        %1337 = vmatprep.subr.mxu0 0.0
        %1338 = vmatpush1.xpose.msra.mxu0 0.0
        %1339 = vmatprep.subr.mxu0 0.0
        %1340 = vmatpush1.xpose.msra.mxu0 0.0
        %1341 = vmatprep.subr.mxu0 0.0
        %1342 = vmatpush1.xpose.msra.mxu0 0.0
        %1343 = vmatprep.subr.mxu0 0.0
        %1344 = vmatpush1.xpose.msra.mxu0 0.0
        %1345 = vmatprep.subr.mxu0 0.0
        %1346 = vmatpush1.xpose.msra.mxu0 0.0
        %1347 = vmatprep.subr.mxu0 0.0
        %1348 = vmatpush1.xpose.msra.mxu0 0.0
        %1349 = vmatprep.subr.mxu0 0.0
        %1350 = vmatpush1.xpose.msra.mxu0 0.0
        %1351 = vmatprep.subr.mxu0 0.0
        %1352 = vmatpush1.xpose.msra.mxu0 0.0
        %1353 = vmatprep.subr.mxu0 0.0
        %1354 = vmatpush1.xpose.msra.mxu0 0.0
        %1355 = vmatprep.mubr.f32.mxu0 0.0
        %1356 = vmatmul.mubr.f32.gmra.mrb[0].mxu0 %v1280
        %v1357 = vpop.f32.mrb[0].mxu0
        %v1358 = vadd.f32 0.0, %v1357
        %v1359 = vpop.f32.mrb[0].mxu0
        %1360 = vmatprep.mubr.f32.mxu0 0.0
        %1361 = vmatmul.mubr.f32.gmra.mrb[0].mxu0 %v1283
        %v1362 = vpop.f32.mrb[0].mxu0
        %v1363 = vadd.f32 0.0, %v1362
        %v1364 = vpop.f32.mrb[0].mxu0
        %1365 = vdwg.mxu0
        %v1366 = vxor.u32 %v1358, 2147483648
        %v1367 = vxor.u32 %v1363, 2147483648
        %v1368 = vmul.f32 %v1366, 1.442695
        %v1369 = vpow.pop %v1368
        %v1370 = vmul.f32 %v1367, 1.442695
        %v1371 = vpow.pop %v1370
        %v1372 = vadd.f32 %v1369, 1.0
        %v1373 = vadd.f32 %v1371, 1.0
        %v1374 = vrcp.pop %v1372
        %v1375 = vmul.f32 1.0, %v1374
        %v1376 = vrcp.pop %v1373
        %v1377 = vmul.f32 1.0, %v1376
        %v1378 = vadd.f32 %v1375, 0.0
        %v1379 = vadd.f32 %v1377, 0.0
        %1380 = vrot.lane.b32.xlu0 %v301, 126
        %v1381 = vpop.permute.xlu0 %1380
        %1382 = vrot.lane.b32.xlu0 %v306, 126
        %v1383 = vpop.permute.xlu0 %1382
        %1384 = vrot.lane.b32.xlu0 %v418, 126
        %v1385 = vpop.permute.xlu0 %1384
        %1386 = vrot.lane.b32.xlu0 %v423, 126
        %v1387 = vpop.permute.xlu0 %1386
        %v1388 = vsel %vm436, %v1381, 0
        %v1390 = vsel %vm436, %v1383, 0
        %v1392 = vsel %vm436, %v1385, 0
        %v1394 = vsel %vm436, %v1387, 0
        %1396 = vmatprep.subr.mxu0 0.0
        %1397 = vmatpush1.xpose.msra.mxu0 %v1392
        %1398 = vmatprep.subr.mxu0 0.0
        %1399 = vmatpush1.xpose.msra.mxu0 %v1394
        %1400 = vmatprep.subr.mxu0 0.0
        %1401 = vmatpush1.xpose.msra.mxu0 0.0
        %1402 = vmatprep.subr.mxu0 0.0
        %1403 = vmatpush1.xpose.msra.mxu0 0.0
        %1404 = vmatprep.subr.mxu0 0.0
        %1405 = vmatpush1.xpose.msra.mxu0 0.0
        %1406 = vmatprep.subr.mxu0 0.0
        %1407 = vmatpush1.xpose.msra.mxu0 0.0
        %1408 = vmatprep.subr.mxu0 0.0
        %1409 = vmatpush1.xpose.msra.mxu0 0.0
        %1410 = vmatprep.subr.mxu0 0.0
        %1411 = vmatpush1.xpose.msra.mxu0 0.0
        %1412 = vmatprep.subr.mxu0 0.0
        %1413 = vmatpush1.xpose.msra.mxu0 0.0
        %1414 = vmatprep.subr.mxu0 0.0
        %1415 = vmatpush1.xpose.msra.mxu0 0.0
        %1416 = vmatprep.subr.mxu0 0.0
        %1417 = vmatpush1.xpose.msra.mxu0 0.0
        %1418 = vmatprep.subr.mxu0 0.0
        %1419 = vmatpush1.xpose.msra.mxu0 0.0
        %1420 = vmatprep.subr.mxu0 0.0
        %1421 = vmatpush1.xpose.msra.mxu0 0.0
        %1422 = vmatprep.subr.mxu0 0.0
        %1423 = vmatpush1.xpose.msra.mxu0 0.0
        %1424 = vmatprep.subr.mxu0 0.0
        %1425 = vmatpush1.xpose.msra.mxu0 0.0
        %1426 = vmatprep.subr.mxu0 0.0
        %1427 = vmatpush1.xpose.msra.mxu0 0.0
        %1428 = vmatprep.subr.mxu0 0.0
        %1429 = vmatpush1.xpose.msra.mxu0 0.0
        %1430 = vmatprep.subr.mxu0 0.0
        %1431 = vmatpush1.xpose.msra.mxu0 0.0
        %1432 = vmatprep.subr.mxu0 0.0
        %1433 = vmatpush1.xpose.msra.mxu0 0.0
        %1434 = vmatprep.subr.mxu0 0.0
        %1435 = vmatpush1.xpose.msra.mxu0 0.0
        %1436 = vmatprep.subr.mxu0 0.0
        %1437 = vmatpush1.xpose.msra.mxu0 0.0
        %1438 = vmatprep.subr.mxu0 0.0
        %1439 = vmatpush1.xpose.msra.mxu0 0.0
        %1440 = vmatprep.subr.mxu0 0.0
        %1441 = vmatpush1.xpose.msra.mxu0 0.0
        %1442 = vmatprep.subr.mxu0 0.0
        %1443 = vmatpush1.xpose.msra.mxu0 0.0
        %1444 = vmatprep.subr.mxu0 0.0
        %1445 = vmatpush1.xpose.msra.mxu0 0.0
        %1446 = vmatprep.subr.mxu0 0.0
        %1447 = vmatpush1.xpose.msra.mxu0 0.0
        %1448 = vmatprep.subr.mxu0 0.0
        %1449 = vmatpush1.xpose.msra.mxu0 0.0
        %1450 = vmatprep.subr.mxu0 0.0
        %1451 = vmatpush1.xpose.msra.mxu0 0.0
        %1452 = vmatprep.subr.mxu0 0.0
        %1453 = vmatpush1.xpose.msra.mxu0 0.0
        %1454 = vmatprep.subr.mxu0 0.0
        %1455 = vmatpush1.xpose.msra.mxu0 0.0
        %1456 = vmatprep.subr.mxu0 0.0
        %1457 = vmatpush1.xpose.msra.mxu0 0.0
        %1458 = vmatprep.subr.mxu0 0.0
        %1459 = vmatpush1.xpose.msra.mxu0 0.0
        %1460 = vmatprep.mubr.f32.mxu0 0.0
        %1461 = vmatmul.mubr.f32.gmra.mrb[0].mxu0 %v1388
        %v1462 = vpop.f32.mrb[0].mxu0
        %v1463 = vadd.f32 0.0, %v1462
        %v1464 = vpop.f32.mrb[0].mxu0
        %1465 = vmatprep.mubr.f32.mxu0 0.0
        %1466 = vmatmul.mubr.f32.gmra.mrb[0].mxu0 %v1390
        %v1467 = vpop.f32.mrb[0].mxu0
        %v1468 = vadd.f32 0.0, %v1467
        %v1469 = vpop.f32.mrb[0].mxu0
        %1470 = vdwg.mxu0
        %v1471 = vxor.u32 %v1463, 2147483648
        %v1472 = vxor.u32 %v1468, 2147483648
        %v1473 = vmul.f32 %v1471, 1.442695
        %v1474 = vpow.pop %v1473
        %v1475 = vmul.f32 %v1472, 1.442695
        %v1476 = vpow.pop %v1475
        %v1477 = vadd.f32 %v1474, 1.0
        %v1478 = vadd.f32 %v1476, 1.0
        %v1479 = vrcp.pop %v1477
        %v1480 = vmul.f32 1.0, %v1479
        %v1481 = vrcp.pop %v1478
        %v1482 = vmul.f32 1.0, %v1481
        %v1483 = vadd.f32 %v1378, %v1480
        %v1484 = vadd.f32 %v1379, %v1482
        %1485 = vrot.lane.b32.xlu0 %v301, 124
        %v1486 = vpop.permute.xlu0 %1485
        %1487 = vrot.lane.b32.xlu0 %v306, 124
        %v1488 = vpop.permute.xlu0 %1487
        %1489 = vrot.lane.b32.xlu0 %v418, 124
        %v1490 = vpop.permute.xlu0 %1489
        %1491 = vrot.lane.b32.xlu0 %v423, 124
        %v1492 = vpop.permute.xlu0 %1491
        %v1493 = vsel %vm436, %v1486, 0
        %v1495 = vsel %vm436, %v1488, 0
        %v1497 = vsel %vm436, %v1490, 0
        %v1499 = vsel %vm436, %v1492, 0
        %1501 = vmatprep.subr.mxu0 0.0
        %1502 = vmatpush1.xpose.msra.mxu0 %v1497
        %1503 = vmatprep.subr.mxu0 0.0
        %1504 = vmatpush1.xpose.msra.mxu0 %v1499
        %1505 = vmatprep.subr.mxu0 0.0
        %1506 = vmatpush1.xpose.msra.mxu0 0.0
        %1507 = vmatprep.subr.mxu0 0.0
        %1508 = vmatpush1.xpose.msra.mxu0 0.0
        %1509 = vmatprep.subr.mxu0 0.0
        %1510 = vmatpush1.xpose.msra.mxu0 0.0
        %1511 = vmatprep.subr.mxu0 0.0
        %1512 = vmatpush1.xpose.msra.mxu0 0.0
        %1513 = vmatprep.subr.mxu0 0.0
        %1514 = vmatpush1.xpose.msra.mxu0 0.0
        %1515 = vmatprep.subr.mxu0 0.0
        %1516 = vmatpush1.xpose.msra.mxu0 0.0
        %1517 = vmatprep.subr.mxu0 0.0
        %1518 = vmatpush1.xpose.msra.mxu0 0.0
        %1519 = vmatprep.subr.mxu0 0.0
        %1520 = vmatpush1.xpose.msra.mxu0 0.0
        %1521 = vmatprep.subr.mxu0 0.0
        %1522 = vmatpush1.xpose.msra.mxu0 0.0
        %1523 = vmatprep.subr.mxu0 0.0
        %1524 = vmatpush1.xpose.msra.mxu0 0.0
        %1525 = vmatprep.subr.mxu0 0.0
        %1526 = vmatpush1.xpose.msra.mxu0 0.0
        %1527 = vmatprep.subr.mxu0 0.0
        %1528 = vmatpush1.xpose.msra.mxu0 0.0
        %1529 = vmatprep.subr.mxu0 0.0
        %1530 = vmatpush1.xpose.msra.mxu0 0.0
        %1531 = vmatprep.subr.mxu0 0.0
        %1532 = vmatpush1.xpose.msra.mxu0 0.0
        %1533 = vmatprep.subr.mxu0 0.0
        %1534 = vmatpush1.xpose.msra.mxu0 0.0
        %1535 = vmatprep.subr.mxu0 0.0
        %1536 = vmatpush1.xpose.msra.mxu0 0.0
        %1537 = vmatprep.subr.mxu0 0.0
        %1538 = vmatpush1.xpose.msra.mxu0 0.0
        %1539 = vmatprep.subr.mxu0 0.0
        %1540 = vmatpush1.xpose.msra.mxu0 0.0
        %1541 = vmatprep.subr.mxu0 0.0
        %1542 = vmatpush1.xpose.msra.mxu0 0.0
        %1543 = vmatprep.subr.mxu0 0.0
        %1544 = vmatpush1.xpose.msra.mxu0 0.0
        %1545 = vmatprep.subr.mxu0 0.0
        %1546 = vmatpush1.xpose.msra.mxu0 0.0
        %1547 = vmatprep.subr.mxu0 0.0
        %1548 = vmatpush1.xpose.msra.mxu0 0.0
        %1549 = vmatprep.subr.mxu0 0.0
        %1550 = vmatpush1.xpose.msra.mxu0 0.0
        %1551 = vmatprep.subr.mxu0 0.0
        %1552 = vmatpush1.xpose.msra.mxu0 0.0
        %1553 = vmatprep.subr.mxu0 0.0
        %1554 = vmatpush1.xpose.msra.mxu0 0.0
        %1555 = vmatprep.subr.mxu0 0.0
        %1556 = vmatpush1.xpose.msra.mxu0 0.0
        %1557 = vmatprep.subr.mxu0 0.0
        %1558 = vmatpush1.xpose.msra.mxu0 0.0
        %1559 = vmatprep.subr.mxu0 0.0
        %1560 = vmatpush1.xpose.msra.mxu0 0.0
        %1561 = vmatprep.subr.mxu0 0.0
        %1562 = vmatpush1.xpose.msra.mxu0 0.0
        %1563 = vmatprep.subr.mxu0 0.0
        %1564 = vmatpush1.xpose.msra.mxu0 0.0
        %1565 = vmatprep.mubr.f32.mxu0 0.0
        %1566 = vmatmul.mubr.f32.gmra.mrb[0].mxu0 %v1493
        %v1567 = vpop.f32.mrb[0].mxu0
        %v1568 = vadd.f32 0.0, %v1567
        %v1569 = vpop.f32.mrb[0].mxu0
        %1570 = vmatprep.mubr.f32.mxu0 0.0
        %1571 = vmatmul.mubr.f32.gmra.mrb[0].mxu0 %v1495
        %v1572 = vpop.f32.mrb[0].mxu0
        %v1573 = vadd.f32 0.0, %v1572
        %v1574 = vpop.f32.mrb[0].mxu0
        %1575 = vdwg.mxu0
        %v1576 = vxor.u32 %v1568, 2147483648
        %v1577 = vxor.u32 %v1573, 2147483648
        %v1578 = vmul.f32 %v1576, 1.442695
        %v1579 = vpow.pop %v1578
        %v1580 = vmul.f32 %v1577, 1.442695
        %v1581 = vpow.pop %v1580
        %v1582 = vadd.f32 %v1579, 1.0
        %v1583 = vadd.f32 %v1581, 1.0
        %v1584 = vrcp.pop %v1582
        %v1585 = vmul.f32 1.0, %v1584
        %v1586 = vrcp.pop %v1583
        %v1587 = vmul.f32 1.0, %v1586
        %v1588 = vadd.f32 %v1483, %v1585
        %v1589 = vadd.f32 %v1484, %v1587
        %1590 = vrot.lane.b32.xlu0 %v301, 122
        %v1591 = vpop.permute.xlu0 %1590
        %1592 = vrot.lane.b32.xlu0 %v306, 122
        %v1593 = vpop.permute.xlu0 %1592
        %1594 = vrot.lane.b32.xlu0 %v418, 122
        %v1595 = vpop.permute.xlu0 %1594
        %1596 = vrot.lane.b32.xlu0 %v423, 122
        %v1597 = vpop.permute.xlu0 %1596
        %v1598 = vsel %vm436, %v1591, 0
        %v1600 = vsel %vm436, %v1593, 0
        %v1602 = vsel %vm436, %v1595, 0
        %v1604 = vsel %vm436, %v1597, 0
        %1606 = vmatprep.subr.mxu0 0.0
        %1607 = vmatpush1.xpose.msra.mxu0 %v1602
        %1608 = vmatprep.subr.mxu0 0.0
        %1609 = vmatpush1.xpose.msra.mxu0 %v1604
        %1610 = vmatprep.subr.mxu0 0.0
        %1611 = vmatpush1.xpose.msra.mxu0 0.0
        %1612 = vmatprep.subr.mxu0 0.0
        %1613 = vmatpush1.xpose.msra.mxu0 0.0
        %1614 = vmatprep.subr.mxu0 0.0
        %1615 = vmatpush1.xpose.msra.mxu0 0.0
        %1616 = vmatprep.subr.mxu0 0.0
        %1617 = vmatpush1.xpose.msra.mxu0 0.0
        %1618 = vmatprep.subr.mxu0 0.0
        %1619 = vmatpush1.xpose.msra.mxu0 0.0
        %1620 = vmatprep.subr.mxu0 0.0
        %1621 = vmatpush1.xpose.msra.mxu0 0.0
        %1622 = vmatprep.subr.mxu0 0.0
        %1623 = vmatpush1.xpose.msra.mxu0 0.0
        %1624 = vmatprep.subr.mxu0 0.0
        %1625 = vmatpush1.xpose.msra.mxu0 0.0
        %1626 = vmatprep.subr.mxu0 0.0
        %1627 = vmatpush1.xpose.msra.mxu0 0.0
        %1628 = vmatprep.subr.mxu0 0.0
        %1629 = vmatpush1.xpose.msra.mxu0 0.0
        %1630 = vmatprep.subr.mxu0 0.0
        %1631 = vmatpush1.xpose.msra.mxu0 0.0
        %1632 = vmatprep.subr.mxu0 0.0
        %1633 = vmatpush1.xpose.msra.mxu0 0.0
        %1634 = vmatprep.subr.mxu0 0.0
        %1635 = vmatpush1.xpose.msra.mxu0 0.0
        %1636 = vmatprep.subr.mxu0 0.0
        %1637 = vmatpush1.xpose.msra.mxu0 0.0
        %1638 = vmatprep.subr.mxu0 0.0
        %1639 = vmatpush1.xpose.msra.mxu0 0.0
        %1640 = vmatprep.subr.mxu0 0.0
        %1641 = vmatpush1.xpose.msra.mxu0 0.0
        %1642 = vmatprep.subr.mxu0 0.0
        %1643 = vmatpush1.xpose.msra.mxu0 0.0
        %1644 = vmatprep.subr.mxu0 0.0
        %1645 = vmatpush1.xpose.msra.mxu0 0.0
        %1646 = vmatprep.subr.mxu0 0.0
        %1647 = vmatpush1.xpose.msra.mxu0 0.0
        %1648 = vmatprep.subr.mxu0 0.0
        %1649 = vmatpush1.xpose.msra.mxu0 0.0
        %1650 = vmatprep.subr.mxu0 0.0
        %1651 = vmatpush1.xpose.msra.mxu0 0.0
        %1652 = vmatprep.subr.mxu0 0.0
        %1653 = vmatpush1.xpose.msra.mxu0 0.0
        %1654 = vmatprep.subr.mxu0 0.0
        %1655 = vmatpush1.xpose.msra.mxu0 0.0
        %1656 = vmatprep.subr.mxu0 0.0
        %1657 = vmatpush1.xpose.msra.mxu0 0.0
        %1658 = vmatprep.subr.mxu0 0.0
        %1659 = vmatpush1.xpose.msra.mxu0 0.0
        %1660 = vmatprep.subr.mxu0 0.0
        %1661 = vmatpush1.xpose.msra.mxu0 0.0
        %1662 = vmatprep.subr.mxu0 0.0
        %1663 = vmatpush1.xpose.msra.mxu0 0.0
        %1664 = vmatprep.subr.mxu0 0.0
        %1665 = vmatpush1.xpose.msra.mxu0 0.0
        %1666 = vmatprep.subr.mxu0 0.0
        %1667 = vmatpush1.xpose.msra.mxu0 0.0
        %1668 = vmatprep.subr.mxu0 0.0
        %1669 = vmatpush1.xpose.msra.mxu0 0.0
        %1670 = vmatprep.mubr.f32.mxu0 0.0
        %1671 = vmatmul.mubr.f32.gmra.mrb[0].mxu0 %v1598
        %v1672 = vpop.f32.mrb[0].mxu0
        %v1673 = vadd.f32 0.0, %v1672
        %v1674 = vpop.f32.mrb[0].mxu0
        %1675 = vmatprep.mubr.f32.mxu0 0.0
        %1676 = vmatmul.mubr.f32.gmra.mrb[0].mxu0 %v1600
        %v1677 = vpop.f32.mrb[0].mxu0
        %v1678 = vadd.f32 0.0, %v1677
        %v1679 = vpop.f32.mrb[0].mxu0
        %1680 = vdwg.mxu0
        %v1681 = vxor.u32 %v1673, 2147483648
        %v1682 = vxor.u32 %v1678, 2147483648
        %v1683 = vmul.f32 %v1681, 1.442695
        %v1684 = vpow.pop %v1683
        %v1685 = vmul.f32 %v1682, 1.442695
        %v1686 = vpow.pop %v1685
        %v1687 = vadd.f32 %v1684, 1.0
        %v1688 = vadd.f32 %v1686, 1.0
        %v1689 = vrcp.pop %v1687
        %v1690 = vmul.f32 1.0, %v1689
        %v1691 = vrcp.pop %v1688
        %v1692 = vmul.f32 1.0, %v1691
        %v1693 = vadd.f32 %v1588, %v1690
        %v1694 = vadd.f32 %v1589, %v1692
        %v1695 = vmul.f32 %v1693, 0.25
        %v1696 = vmul.f32 %v1694, 0.25
        %s1697 = scalar_lea.vmem %s163, 32 [#allocation2]
        %1698 = vst.msk [vmem:[%s1697] sm:$0xff] %vm855, %v1695
        %1699 = vst.msk [vmem:[%s1697 + $0x8] sm:$0xff] %vm855, %v1696
        %v1701 = vsel %vm436, %v311, 0
        %v1704 = vsel %vm436, %v316, 0
        %v1707 = vsel %vm436, %v428, 0
        %v1710 = vsel %vm436, %v433, 0
        %1712 = vmatprep.subr.mxu0 0.0
        %1713 = vmatpush1.xpose.msra.mxu0 %v1707
        %1714 = vmatprep.subr.mxu0 0.0
        %1715 = vmatpush1.xpose.msra.mxu0 %v1710
        %1716 = vmatprep.subr.mxu0 0.0
        %1717 = vmatpush1.xpose.msra.mxu0 0.0
        %1718 = vmatprep.subr.mxu0 0.0
        %1719 = vmatpush1.xpose.msra.mxu0 0.0
        %1720 = vmatprep.subr.mxu0 0.0
        %1721 = vmatpush1.xpose.msra.mxu0 0.0
        %1722 = vmatprep.subr.mxu0 0.0
        %1723 = vmatpush1.xpose.msra.mxu0 0.0
        %1724 = vmatprep.subr.mxu0 0.0
        %1725 = vmatpush1.xpose.msra.mxu0 0.0
        %1726 = vmatprep.subr.mxu0 0.0
        %1727 = vmatpush1.xpose.msra.mxu0 0.0
        %1728 = vmatprep.subr.mxu0 0.0
        %1729 = vmatpush1.xpose.msra.mxu0 0.0
        %1730 = vmatprep.subr.mxu0 0.0
        %1731 = vmatpush1.xpose.msra.mxu0 0.0
        %1732 = vmatprep.subr.mxu0 0.0
        %1733 = vmatpush1.xpose.msra.mxu0 0.0
        %1734 = vmatprep.subr.mxu0 0.0
        %1735 = vmatpush1.xpose.msra.mxu0 0.0
        %1736 = vmatprep.subr.mxu0 0.0
        %1737 = vmatpush1.xpose.msra.mxu0 0.0
        %1738 = vmatprep.subr.mxu0 0.0
        %1739 = vmatpush1.xpose.msra.mxu0 0.0
        %1740 = vmatprep.subr.mxu0 0.0
        %1741 = vmatpush1.xpose.msra.mxu0 0.0
        %1742 = vmatprep.subr.mxu0 0.0
        %1743 = vmatpush1.xpose.msra.mxu0 0.0
        %1744 = vmatprep.subr.mxu0 0.0
        %1745 = vmatpush1.xpose.msra.mxu0 0.0
        %1746 = vmatprep.subr.mxu0 0.0
        %1747 = vmatpush1.xpose.msra.mxu0 0.0
        %1748 = vmatprep.subr.mxu0 0.0
        %1749 = vmatpush1.xpose.msra.mxu0 0.0
        %1750 = vmatprep.subr.mxu0 0.0
        %1751 = vmatpush1.xpose.msra.mxu0 0.0
        %1752 = vmatprep.subr.mxu0 0.0
        %1753 = vmatpush1.xpose.msra.mxu0 0.0
        %1754 = vmatprep.subr.mxu0 0.0
        %1755 = vmatpush1.xpose.msra.mxu0 0.0
        %1756 = vmatprep.subr.mxu0 0.0
        %1757 = vmatpush1.xpose.msra.mxu0 0.0
        %1758 = vmatprep.subr.mxu0 0.0
        %1759 = vmatpush1.xpose.msra.mxu0 0.0
        %1760 = vmatprep.subr.mxu0 0.0
        %1761 = vmatpush1.xpose.msra.mxu0 0.0
        %1762 = vmatprep.subr.mxu0 0.0
        %1763 = vmatpush1.xpose.msra.mxu0 0.0
        %1764 = vmatprep.subr.mxu0 0.0
        %1765 = vmatpush1.xpose.msra.mxu0 0.0
        %1766 = vmatprep.subr.mxu0 0.0
        %1767 = vmatpush1.xpose.msra.mxu0 0.0
        %1768 = vmatprep.subr.mxu0 0.0
        %1769 = vmatpush1.xpose.msra.mxu0 0.0
        %1770 = vmatprep.subr.mxu0 0.0
        %1771 = vmatpush1.xpose.msra.mxu0 0.0
        %1772 = vmatprep.subr.mxu0 0.0
        %1773 = vmatpush1.xpose.msra.mxu0 0.0
        %1774 = vmatprep.subr.mxu0 0.0
        %1775 = vmatpush1.xpose.msra.mxu0 0.0
        %1776 = vmatprep.mubr.f32.mxu0 0.0
        %1777 = vmatmul.mubr.f32.gmra.mrb[0].mxu0 %v1701
        %v1778 = vpop.f32.mrb[0].mxu0
        %v1779 = vadd.f32 0.0, %v1778
        %v1780 = vpop.f32.mrb[0].mxu0
        %1781 = vmatprep.mubr.f32.mxu0 0.0
        %1782 = vmatmul.mubr.f32.gmra.mrb[0].mxu0 %v1704
        %v1783 = vpop.f32.mrb[0].mxu0
        %v1784 = vadd.f32 0.0, %v1783
        %v1785 = vpop.f32.mrb[0].mxu0
        %1786 = vdwg.mxu0
        %v1787 = vxor.u32 %v1779, 2147483648
        %v1788 = vxor.u32 %v1784, 2147483648
        %v1789 = vmul.f32 %v1787, 1.442695
        %v1790 = vpow.pop %v1789
        %v1791 = vmul.f32 %v1788, 1.442695
        %v1792 = vpow.pop %v1791
        %v1793 = vadd.f32 %v1790, 1.0
        %v1794 = vadd.f32 %v1792, 1.0
        %v1795 = vrcp.pop %v1793
        %v1796 = vmul.f32 1.0, %v1795
        %v1797 = vrcp.pop %v1794
        %v1798 = vmul.f32 1.0, %v1797
        %v1799 = vadd.f32 %v1796, 0.0
        %v1800 = vadd.f32 %v1798, 0.0
        %1801 = vrot.lane.b32.xlu0 %v311, 126
        %v1802 = vpop.permute.xlu0 %1801
        %1803 = vrot.lane.b32.xlu0 %v316, 126
        %v1804 = vpop.permute.xlu0 %1803
        %1805 = vrot.lane.b32.xlu0 %v428, 126
        %v1806 = vpop.permute.xlu0 %1805
        %1807 = vrot.lane.b32.xlu0 %v433, 126
        %v1808 = vpop.permute.xlu0 %1807
        %v1809 = vsel %vm436, %v1802, 0
        %v1811 = vsel %vm436, %v1804, 0
        %v1813 = vsel %vm436, %v1806, 0
        %v1815 = vsel %vm436, %v1808, 0
        %1817 = vmatprep.subr.mxu0 0.0
        %1818 = vmatpush1.xpose.msra.mxu0 %v1813
        %1819 = vmatprep.subr.mxu0 0.0
        %1820 = vmatpush1.xpose.msra.mxu0 %v1815
        %1821 = vmatprep.subr.mxu0 0.0
        %1822 = vmatpush1.xpose.msra.mxu0 0.0
        %1823 = vmatprep.subr.mxu0 0.0
        %1824 = vmatpush1.xpose.msra.mxu0 0.0
        %1825 = vmatprep.subr.mxu0 0.0
        %1826 = vmatpush1.xpose.msra.mxu0 0.0
        %1827 = vmatprep.subr.mxu0 0.0
        %1828 = vmatpush1.xpose.msra.mxu0 0.0
        %1829 = vmatprep.subr.mxu0 0.0
        %1830 = vmatpush1.xpose.msra.mxu0 0.0
        %1831 = vmatprep.subr.mxu0 0.0
        %1832 = vmatpush1.xpose.msra.mxu0 0.0
        %1833 = vmatprep.subr.mxu0 0.0
        %1834 = vmatpush1.xpose.msra.mxu0 0.0
        %1835 = vmatprep.subr.mxu0 0.0
        %1836 = vmatpush1.xpose.msra.mxu0 0.0
        %1837 = vmatprep.subr.mxu0 0.0
        %1838 = vmatpush1.xpose.msra.mxu0 0.0
        %1839 = vmatprep.subr.mxu0 0.0
        %1840 = vmatpush1.xpose.msra.mxu0 0.0
        %1841 = vmatprep.subr.mxu0 0.0
        %1842 = vmatpush1.xpose.msra.mxu0 0.0
        %1843 = vmatprep.subr.mxu0 0.0
        %1844 = vmatpush1.xpose.msra.mxu0 0.0
        %1845 = vmatprep.subr.mxu0 0.0
        %1846 = vmatpush1.xpose.msra.mxu0 0.0
        %1847 = vmatprep.subr.mxu0 0.0
        %1848 = vmatpush1.xpose.msra.mxu0 0.0
        %1849 = vmatprep.subr.mxu0 0.0
        %1850 = vmatpush1.xpose.msra.mxu0 0.0
        %1851 = vmatprep.subr.mxu0 0.0
        %1852 = vmatpush1.xpose.msra.mxu0 0.0
        %1853 = vmatprep.subr.mxu0 0.0
        %1854 = vmatpush1.xpose.msra.mxu0 0.0
        %1855 = vmatprep.subr.mxu0 0.0
        %1856 = vmatpush1.xpose.msra.mxu0 0.0
        %1857 = vmatprep.subr.mxu0 0.0
        %1858 = vmatpush1.xpose.msra.mxu0 0.0
        %1859 = vmatprep.subr.mxu0 0.0
        %1860 = vmatpush1.xpose.msra.mxu0 0.0
        %1861 = vmatprep.subr.mxu0 0.0
        %1862 = vmatpush1.xpose.msra.mxu0 0.0
        %1863 = vmatprep.subr.mxu0 0.0
        %1864 = vmatpush1.xpose.msra.mxu0 0.0
        %1865 = vmatprep.subr.mxu0 0.0
        %1866 = vmatpush1.xpose.msra.mxu0 0.0
        %1867 = vmatprep.subr.mxu0 0.0
        %1868 = vmatpush1.xpose.msra.mxu0 0.0
        %1869 = vmatprep.subr.mxu0 0.0
        %1870 = vmatpush1.xpose.msra.mxu0 0.0
        %1871 = vmatprep.subr.mxu0 0.0
        %1872 = vmatpush1.xpose.msra.mxu0 0.0
        %1873 = vmatprep.subr.mxu0 0.0
        %1874 = vmatpush1.xpose.msra.mxu0 0.0
        %1875 = vmatprep.subr.mxu0 0.0
        %1876 = vmatpush1.xpose.msra.mxu0 0.0
        %1877 = vmatprep.subr.mxu0 0.0
        %1878 = vmatpush1.xpose.msra.mxu0 0.0
        %1879 = vmatprep.subr.mxu0 0.0
        %1880 = vmatpush1.xpose.msra.mxu0 0.0
        %1881 = vmatprep.mubr.f32.mxu0 0.0
        %1882 = vmatmul.mubr.f32.gmra.mrb[0].mxu0 %v1809
        %v1883 = vpop.f32.mrb[0].mxu0
        %v1884 = vadd.f32 0.0, %v1883
        %v1885 = vpop.f32.mrb[0].mxu0
        %1886 = vmatprep.mubr.f32.mxu0 0.0
        %1887 = vmatmul.mubr.f32.gmra.mrb[0].mxu0 %v1811
        %v1888 = vpop.f32.mrb[0].mxu0
        %v1889 = vadd.f32 0.0, %v1888
        %v1890 = vpop.f32.mrb[0].mxu0
        %1891 = vdwg.mxu0
        %v1892 = vxor.u32 %v1884, 2147483648
        %v1893 = vxor.u32 %v1889, 2147483648
        %v1894 = vmul.f32 %v1892, 1.442695
        %v1895 = vpow.pop %v1894
        %v1896 = vmul.f32 %v1893, 1.442695
        %v1897 = vpow.pop %v1896
        %v1898 = vadd.f32 %v1895, 1.0
        %v1899 = vadd.f32 %v1897, 1.0
        %v1900 = vrcp.pop %v1898
        %v1901 = vmul.f32 1.0, %v1900
        %v1902 = vrcp.pop %v1899
        %v1903 = vmul.f32 1.0, %v1902
        %v1904 = vadd.f32 %v1799, %v1901
        %v1905 = vadd.f32 %v1800, %v1903
        %1906 = vrot.lane.b32.xlu0 %v311, 124
        %v1907 = vpop.permute.xlu0 %1906
        %1908 = vrot.lane.b32.xlu0 %v316, 124
        %v1909 = vpop.permute.xlu0 %1908
        %1910 = vrot.lane.b32.xlu0 %v428, 124
        %v1911 = vpop.permute.xlu0 %1910
        %1912 = vrot.lane.b32.xlu0 %v433, 124
        %v1913 = vpop.permute.xlu0 %1912
        %v1914 = vsel %vm436, %v1907, 0
        %v1916 = vsel %vm436, %v1909, 0
        %v1918 = vsel %vm436, %v1911, 0
        %v1920 = vsel %vm436, %v1913, 0
        %1922 = vmatprep.subr.mxu0 0.0
        %1923 = vmatpush1.xpose.msra.mxu0 %v1918
        %1924 = vmatprep.subr.mxu0 0.0
        %1925 = vmatpush1.xpose.msra.mxu0 %v1920
        %1926 = vmatprep.subr.mxu0 0.0
        %1927 = vmatpush1.xpose.msra.mxu0 0.0
        %1928 = vmatprep.subr.mxu0 0.0
        %1929 = vmatpush1.xpose.msra.mxu0 0.0
        %1930 = vmatprep.subr.mxu0 0.0
        %1931 = vmatpush1.xpose.msra.mxu0 0.0
        %1932 = vmatprep.subr.mxu0 0.0
        %1933 = vmatpush1.xpose.msra.mxu0 0.0
        %1934 = vmatprep.subr.mxu0 0.0
        %1935 = vmatpush1.xpose.msra.mxu0 0.0
        %1936 = vmatprep.subr.mxu0 0.0
        %1937 = vmatpush1.xpose.msra.mxu0 0.0
        %1938 = vmatprep.subr.mxu0 0.0
        %1939 = vmatpush1.xpose.msra.mxu0 0.0
        %1940 = vmatprep.subr.mxu0 0.0
        %1941 = vmatpush1.xpose.msra.mxu0 0.0
        %1942 = vmatprep.subr.mxu0 0.0
        %1943 = vmatpush1.xpose.msra.mxu0 0.0
        %1944 = vmatprep.subr.mxu0 0.0
        %1945 = vmatpush1.xpose.msra.mxu0 0.0
        %1946 = vmatprep.subr.mxu0 0.0
        %1947 = vmatpush1.xpose.msra.mxu0 0.0
        %1948 = vmatprep.subr.mxu0 0.0
        %1949 = vmatpush1.xpose.msra.mxu0 0.0
        %1950 = vmatprep.subr.mxu0 0.0
        %1951 = vmatpush1.xpose.msra.mxu0 0.0
        %1952 = vmatprep.subr.mxu0 0.0
        %1953 = vmatpush1.xpose.msra.mxu0 0.0
        %1954 = vmatprep.subr.mxu0 0.0
        %1955 = vmatpush1.xpose.msra.mxu0 0.0
        %1956 = vmatprep.subr.mxu0 0.0
        %1957 = vmatpush1.xpose.msra.mxu0 0.0
        %1958 = vmatprep.subr.mxu0 0.0
        %1959 = vmatpush1.xpose.msra.mxu0 0.0
        %1960 = vmatprep.subr.mxu0 0.0
        %1961 = vmatpush1.xpose.msra.mxu0 0.0
        %1962 = vmatprep.subr.mxu0 0.0
        %1963 = vmatpush1.xpose.msra.mxu0 0.0
        %1964 = vmatprep.subr.mxu0 0.0
        %1965 = vmatpush1.xpose.msra.mxu0 0.0
        %1966 = vmatprep.subr.mxu0 0.0
        %1967 = vmatpush1.xpose.msra.mxu0 0.0
        %1968 = vmatprep.subr.mxu0 0.0
        %1969 = vmatpush1.xpose.msra.mxu0 0.0
        %1970 = vmatprep.subr.mxu0 0.0
        %1971 = vmatpush1.xpose.msra.mxu0 0.0
        %1972 = vmatprep.subr.mxu0 0.0
        %1973 = vmatpush1.xpose.msra.mxu0 0.0
        %1974 = vmatprep.subr.mxu0 0.0
        %1975 = vmatpush1.xpose.msra.mxu0 0.0
        %1976 = vmatprep.subr.mxu0 0.0
        %1977 = vmatpush1.xpose.msra.mxu0 0.0
        %1978 = vmatprep.subr.mxu0 0.0
        %1979 = vmatpush1.xpose.msra.mxu0 0.0
        %1980 = vmatprep.subr.mxu0 0.0
        %1981 = vmatpush1.xpose.msra.mxu0 0.0
        %1982 = vmatprep.subr.mxu0 0.0
        %1983 = vmatpush1.xpose.msra.mxu0 0.0
        %1984 = vmatprep.subr.mxu0 0.0
        %1985 = vmatpush1.xpose.msra.mxu0 0.0
        %1986 = vmatprep.mubr.f32.mxu0 0.0
        %1987 = vmatmul.mubr.f32.gmra.mrb[0].mxu0 %v1914
        %v1988 = vpop.f32.mrb[0].mxu0
        %v1989 = vadd.f32 0.0, %v1988
        %v1990 = vpop.f32.mrb[0].mxu0
        %1991 = vmatprep.mubr.f32.mxu0 0.0
        %1992 = vmatmul.mubr.f32.gmra.mrb[0].mxu0 %v1916
        %v1993 = vpop.f32.mrb[0].mxu0
        %v1994 = vadd.f32 0.0, %v1993
        %v1995 = vpop.f32.mrb[0].mxu0
        %1996 = vdwg.mxu0
        %v1997 = vxor.u32 %v1989, 2147483648
        %v1998 = vxor.u32 %v1994, 2147483648
        %v1999 = vmul.f32 %v1997, 1.442695
        %v2000 = vpow.pop %v1999
        %v2001 = vmul.f32 %v1998, 1.442695
        %v2002 = vpow.pop %v2001
        %v2003 = vadd.f32 %v2000, 1.0
        %v2004 = vadd.f32 %v2002, 1.0
        %v2005 = vrcp.pop %v2003
        %v2006 = vmul.f32 1.0, %v2005
        %v2007 = vrcp.pop %v2004
        %v2008 = vmul.f32 1.0, %v2007
        %v2009 = vadd.f32 %v1904, %v2006
        %v2010 = vadd.f32 %v1905, %v2008
        %2011 = vrot.lane.b32.xlu0 %v311, 122
        %v2012 = vpop.permute.xlu0 %2011
        %2013 = vrot.lane.b32.xlu0 %v316, 122
        %v2014 = vpop.permute.xlu0 %2013
        %2015 = vrot.lane.b32.xlu0 %v428, 122
        %v2016 = vpop.permute.xlu0 %2015
        %2017 = vrot.lane.b32.xlu0 %v433, 122
        %v2018 = vpop.permute.xlu0 %2017
        %v2019 = vsel %vm436, %v2012, 0
        %v2021 = vsel %vm436, %v2014, 0
        %v2023 = vsel %vm436, %v2016, 0
        %v2025 = vsel %vm436, %v2018, 0
        %2027 = vmatprep.subr.mxu0 0.0
        %2028 = vmatpush1.xpose.msra.mxu0 %v2023
        %2029 = vmatprep.subr.mxu0 0.0
        %2030 = vmatpush1.xpose.msra.mxu0 %v2025
        %2031 = vmatprep.subr.mxu0 0.0
        %2032 = vmatpush1.xpose.msra.mxu0 0.0
        %2033 = vmatprep.subr.mxu0 0.0
        %2034 = vmatpush1.xpose.msra.mxu0 0.0
        %2035 = vmatprep.subr.mxu0 0.0
        %2036 = vmatpush1.xpose.msra.mxu0 0.0
        %2037 = vmatprep.subr.mxu0 0.0
        %2038 = vmatpush1.xpose.msra.mxu0 0.0
        %2039 = vmatprep.subr.mxu0 0.0
        %2040 = vmatpush1.xpose.msra.mxu0 0.0
        %2041 = vmatprep.subr.mxu0 0.0
        %2042 = vmatpush1.xpose.msra.mxu0 0.0
        %2043 = vmatprep.subr.mxu0 0.0
        %2044 = vmatpush1.xpose.msra.mxu0 0.0
        %2045 = vmatprep.subr.mxu0 0.0
        %2046 = vmatpush1.xpose.msra.mxu0 0.0
        %2047 = vmatprep.subr.mxu0 0.0
        %2048 = vmatpush1.xpose.msra.mxu0 0.0
        %2049 = vmatprep.subr.mxu0 0.0
        %2050 = vmatpush1.xpose.msra.mxu0 0.0
        %2051 = vmatprep.subr.mxu0 0.0
        %2052 = vmatpush1.xpose.msra.mxu0 0.0
        %2053 = vmatprep.subr.mxu0 0.0
        %2054 = vmatpush1.xpose.msra.mxu0 0.0
        %2055 = vmatprep.subr.mxu0 0.0
        %2056 = vmatpush1.xpose.msra.mxu0 0.0
        %2057 = vmatprep.subr.mxu0 0.0
        %2058 = vmatpush1.xpose.msra.mxu0 0.0
        %2059 = vmatprep.subr.mxu0 0.0
        %2060 = vmatpush1.xpose.msra.mxu0 0.0
        %2061 = vmatprep.subr.mxu0 0.0
        %2062 = vmatpush1.xpose.msra.mxu0 0.0
        %2063 = vmatprep.subr.mxu0 0.0
        %2064 = vmatpush1.xpose.msra.mxu0 0.0
        %2065 = vmatprep.subr.mxu0 0.0
        %2066 = vmatpush1.xpose.msra.mxu0 0.0
        %2067 = vmatprep.subr.mxu0 0.0
        %2068 = vmatpush1.xpose.msra.mxu0 0.0
        %2069 = vmatprep.subr.mxu0 0.0
        %2070 = vmatpush1.xpose.msra.mxu0 0.0
        %2071 = vmatprep.subr.mxu0 0.0
        %2072 = vmatpush1.xpose.msra.mxu0 0.0
        %2073 = vmatprep.subr.mxu0 0.0
        %2074 = vmatpush1.xpose.msra.mxu0 0.0
        %2075 = vmatprep.subr.mxu0 0.0
        %2076 = vmatpush1.xpose.msra.mxu0 0.0
        %2077 = vmatprep.subr.mxu0 0.0
        %2078 = vmatpush1.xpose.msra.mxu0 0.0
        %2079 = vmatprep.subr.mxu0 0.0
        %2080 = vmatpush1.xpose.msra.mxu0 0.0
        %2081 = vmatprep.subr.mxu0 0.0
        %2082 = vmatpush1.xpose.msra.mxu0 0.0
        %2083 = vmatprep.subr.mxu0 0.0
        %2084 = vmatpush1.xpose.msra.mxu0 0.0
        %2085 = vmatprep.subr.mxu0 0.0
        %2086 = vmatpush1.xpose.msra.mxu0 0.0
        %2087 = vmatprep.subr.mxu0 0.0
        %2088 = vmatpush1.xpose.msra.mxu0 0.0
        %2089 = vmatprep.subr.mxu0 0.0
        %2090 = vmatpush1.xpose.msra.mxu0 0.0
        %2091 = vmatprep.mubr.f32.mxu0 0.0
        %2092 = vmatmul.mubr.f32.gmra.mrb[0].mxu0 %v2019
        %v2093 = vpop.f32.mrb[0].mxu0
        %v2094 = vadd.f32 0.0, %v2093
        %v2095 = vpop.f32.mrb[0].mxu0
        %2096 = vmatprep.mubr.f32.mxu0 0.0
        %2097 = vmatmul.mubr.f32.gmra.mrb[0].mxu0 %v2021
        %v2098 = vpop.f32.mrb[0].mxu0
        %v2099 = vadd.f32 0.0, %v2098
        %v2100 = vpop.f32.mrb[0].mxu0
        %2101 = vdwg.mxu0
        %v2102 = vxor.u32 %v2094, 2147483648
        %v2103 = vxor.u32 %v2099, 2147483648
        %v2104 = vmul.f32 %v2102, 1.442695
        %v2105 = vpow.pop %v2104
        %v2106 = vmul.f32 %v2103, 1.442695
        %v2107 = vpow.pop %v2106
        %v2108 = vadd.f32 %v2105, 1.0
        %v2109 = vadd.f32 %v2107, 1.0
        %v2110 = vrcp.pop %v2108
        %v2111 = vmul.f32 1.0, %v2110
        %v2112 = vrcp.pop %v2109
        %v2113 = vmul.f32 1.0, %v2112
        %v2114 = vadd.f32 %v2009, %v2111
        %v2115 = vadd.f32 %v2010, %v2113
        %v2116 = vmul.f32 %v2114, 0.25
        %v2117 = vmul.f32 %v2115, 0.25
        %s2118 = scalar_lea.vmem %s163, 48 [#allocation2]
        %2119 = vst.msk [vmem:[%s2118] sm:$0xff] %vm855, %v2116
        %2120 = vst.msk [vmem:[%s2118 + $0x8] sm:$0xff] %vm855, %v2117
        %s2121 = sand.u32 %s93, 1
        %s2122 = scalar_lea.sflag [#allocation3], %s2121
        %s2123 = sand.u32 %s93, 1
        %s2124 = smul.addr %s2123, 64
        %s2125 = scalar_lea.vmem [#allocation2], %s2124
        // Predicated region
        $region33: #{tpu_custom_call.1} parent=31 // pred_check
          %p2126 = pneg %p103
        $region34: #{tpu_custom_call.1} parent=31 // pred_check_branch
          %2128 = sbr.rel (%p2126) target = $region36
        $region35: #{tpu_custom_call.1} parent=31 // pred_region
          %s2130 = ssub.s32 1024, 1024
          %2131 = vsyncadd %s2122, %s2130
          %s2132 = smul.addr %s17, 8
          %s2133 = smul.addr %s2132, 128
          %s2134 = scalar_lea.hbm %s3, %s2133
          %s2135 = sshll.u32 %s2125, 4
          %s2136 = int_to_ptr.vmem [resolvable:$true] %s2135
          %2141 = dma.vmem_to_hbm [thread:$0]  %s2136, 1024, %s2134, %s2122, 128, 128, 8
        $region36: #{tpu_custom_call.1} parent=31 // pred_fallthru
          _
      $region32: #{tpu_custom_call.1} parent=5 // pred_fallthru
        _
      %p2142 = scmp.le.s32.totalorder 2, %s12
      // Predicated region
      $region37: #{tpu_custom_call.1} parent=5 // pred_check
        %p2143 = pneg %p2142
      $region38: #{tpu_custom_call.1} parent=5 // pred_check_branch
        %2145 = sbr.rel (%p2143) target = $region40
      $region39: #{tpu_custom_call.1} parent=5 // pred_region
        %s2146 = ssub.s32 %s12, 2
        // Predicated region
        $region41: #{tpu_custom_call.1} parent=39 // pred_check
          %p2147 = pneg %p109
        $region42: #{tpu_custom_call.1} parent=39 // pred_check_branch
          %2149 = sbr.rel (%p2147) target = $region44
        $region43: #{tpu_custom_call.1} parent=39 // pred_region
          %s2150 = sand.u32 %s94, 1
          %s2151 = scalar_lea.sflag [#allocation3], %s2150
          %s2152 = sand.u32 %s94, 1
          %s2153 = smul.addr %s2152, 64
          %s2154 = scalar_lea.vmem [#allocation2], %s2153
          %2155 = dma.done %s2151, 1024
        $region44: #{tpu_custom_call.1} parent=39 // pred_fallthru
          _
      $region40: #{tpu_custom_call.1} parent=5 // pred_fallthru
        _
    $region6: #{tpu_custom_call.1} parent=1 // loop_footer
      %s16 = sadd.s32 1, %s12
    $region7: #{tpu_custom_call.1} parent=1 // loop_footer_branch
      %11 = sbr.rel target = $region3
    $region8: #{tpu_custom_call.1} parent=1 // loop_exit
      _
    %2156 = vsyncpa [#allocation3], 1
    %s2157 = scalar_lea.sflag [#allocation3], 1
    %2158 = vsyncpa %s2157, 1

</llo_original>
